<compile_context>
chip_gen: v7x
topology: tpu7x:2x2x1
jax: 0.10.0
libtpu: 0.0.40
codegen_flags: <defaults>
</compile_context>

<pallas_src>
import functools
import math

import jax
import jax.numpy as jnp
from jax.experimental import pallas as pl
from jax.experimental.pallas import tpu as pltpu


# ----------------------------- tiling / VMEM helpers --------------------------

_VMEM_BUDGET = 40 << 20     # per-kernel working-set budget; safe on v7x's 64 MiB per TC
_VMEM_FLOOR = 16 << 20      # never request below the smallest default scoped limit (v5e)
_VMEM_CEIL = 48 << 20       # leave headroom on v7x


def _divisor_tile(dim, cap):
    """Largest divisor of dim that is <= cap, preferring MXU/sublane-aligned values."""
    cap = max(1, min(dim, cap))
    divs = [d for d in range(1, cap + 1) if dim % d == 0]
    for align in (512, 256, 128, 8):
        aligned = [d for d in divs if d % align == 0]
        if aligned:
            return aligned[-1]
    return divs[-1]


def _dense_tiles(M, N, K, out_bytes, full_tn=False, extra_row_bytes=0):
    """Pick (tm, tn, tk) so double-buffered tiles + f32 accumulator fit the VMEM budget."""
    tk = _divisor_tile(K, 2048)
    tn = N if full_tn else _divisor_tile(N, 1536)
    fixed = 2 * tk * tn * 2 + 8 * tn * 4                      # weight dbl-buffer + vectors
    per_row = 2 * tk * 2 + 2 * tn * out_bytes + tn * 4 + extra_row_bytes
    cap = 1024
    tm = _divisor_tile(M, cap)
    while cap > 8 and fixed + tm * per_row > _VMEM_BUDGET:
        cap //= 2
        tm = _divisor_tile(M, cap)
    return tm, tn, tk, fixed + tm * per_row


def _compiler_params(sems, need_bytes):
    limit = min(max(int(need_bytes * 1.3) + (2 << 20), _VMEM_FLOOR), _VMEM_CEIL)
    return pltpu.CompilerParams(dimension_semantics=sems, vmem_limit_bytes=limit)


# ----------------------------- dense (tiled matmul, bf16 out) -----------------

def _dense_kernel(x_ref, w_ref, b_ref, o_ref, acc_ref, *, act):
    @pl.when(pl.program_id(2) == 0)
    def _():
        acc_ref[...] = jnp.zeros_like(acc_ref)

    acc_ref[...] += jnp.dot(x_ref[...], w_ref[...],
                            preferred_element_type=jnp.float32)

    @pl.when(pl.program_id(2) == pl.num_programs(2) - 1)
    def _():
        y = acc_ref[...] + b_ref[...]
        if act == "gelu":
            # HF BERT default "gelu" is the exact (erf) variant.
            y = 0.5 * y * (1.0 + jax.lax.erf(y * (1.0 / math.sqrt(2.0))))
        o_ref[...] = y.astype(o_ref.dtype)


def dense(x, w, b, act="none", out_dtype=jnp.bfloat16):
    """y = act(x @ w + b); x:(M,K) bf16, w:(K,N) bf16, b:(N,) f32 -> (M,N) out_dtype."""
    M, K = x.shape
    _, N = w.shape
    out_bytes = jnp.dtype(out_dtype).itemsize
    tm, tn, tk, need = _dense_tiles(M, N, K, out_bytes)

    return pl.pallas_call(
        functools.partial(_dense_kernel, act=act),
        grid=(M // tm, N // tn, K // tk),
        out_shape=jax.ShapeDtypeStruct((M, N), out_dtype),
        in_specs=[
            pl.BlockSpec((tm, tk), lambda i, j, k: (i, k)),
            pl.BlockSpec((tk, tn), lambda i, j, k: (k, j)),
            pl.BlockSpec((1, tn), lambda i, j, k: (0, j)),
        ],
        out_specs=pl.BlockSpec((tm, tn), lambda i, j, k: (i, j)),
        scratch_shapes=[pltpu.VMEM((tm, tn), jnp.float32)],
        compiler_params=_compiler_params(("parallel", "parallel", "arbitrary"), need),
    )(x, w, b.reshape(1, N).astype(jnp.float32))


# --------------------- dense + residual + LayerNorm (fused epilogue) ----------

def _dense_ln_kernel(x_ref, w_ref, b_ref, r_ref, g_ref, bb_ref, o_ref, acc_ref, *, eps):
    @pl.when(pl.program_id(1) == 0)
    def _():
        acc_ref[...] = jnp.zeros_like(acc_ref)

    acc_ref[...] += jnp.dot(x_ref[...], w_ref[...],
                            preferred_element_type=jnp.float32)

    @pl.when(pl.program_id(1) == pl.num_programs(1) - 1)
    def _():
        y = acc_ref[...] + b_ref[...] + r_ref[...].astype(jnp.float32)
        mu = jnp.mean(y, axis=-1, keepdims=True)
        d = y - mu
        var = jnp.mean(d * d, axis=-1, keepdims=True)
        o_ref[...] = ((d * jax.lax.rsqrt(var + eps)) * g_ref[...]
                      + bb_ref[...]).astype(o_ref.dtype)


def dense_ln(x, w, b, residual, gamma, beta, eps=1e-12, out_dtype=jnp.bfloat16):
    """LayerNorm(x @ w + b + residual); tn = full N so whole rows live in one tile."""
    M, K = x.shape
    _, N = w.shape
    out_bytes = jnp.dtype(out_dtype).itemsize
    # extra_row_bytes: residual tile (bf16, double-buffered)
    tm, _, tk, need = _dense_tiles(M, N, K, out_bytes, full_tn=True,
                                   extra_row_bytes=2 * N * 2)

    row_out = pl.BlockSpec((tm, N), lambda i, k: (i, 0))
    vec = pl.BlockSpec((1, N), lambda i, k: (0, 0))

    return pl.pallas_call(
        functools.partial(_dense_ln_kernel, eps=eps),
        grid=(M // tm, K // tk),
        out_shape=jax.ShapeDtypeStruct((M, N), out_dtype),
        in_specs=[
            pl.BlockSpec((tm, tk), lambda i, k: (i, k)),
            pl.BlockSpec((tk, N), lambda i, k: (k, 0)),
            vec,                                   # bias
            row_out,                               # residual (DMA'd once per i)
            vec,                                   # gamma
            vec,                                   # beta
        ],
        out_specs=row_out,
        scratch_shapes=[pltpu.VMEM((tm, N), jnp.float32)],
        compiler_params=_compiler_params(("parallel", "arbitrary"), need),
    )(x, w, b.reshape(1, N).astype(jnp.float32), residual,
      gamma.reshape(1, N), beta.reshape(1, N))


# ----------------------------- layernorm (embedding LN) -----------------------

def _ln_kernel(x_ref, g_ref, b_ref, o_ref, *, eps):
    x = x_ref[...]
    mu = jnp.mean(x, axis=-1, keepdims=True)
    d = x - mu
    var = jnp.mean(d * d, axis=-1, keepdims=True)
    o_ref[...] = ((d * jax.lax.rsqrt(var + eps)) * g_ref[...]
                  + b_ref[...]).astype(o_ref.dtype)


def layernorm(x, gamma, beta, eps=1e-12, out_dtype=jnp.bfloat16):
    """LayerNorm over last dim; x:(M,D) f32, row-tiled grid, bf16 output."""
    M, D = x.shape
    tm = _divisor_tile(M, 512)
    need = 2 * tm * D * (4 + jnp.dtype(out_dtype).itemsize) + 8 * D * 4
    row_spec = pl.BlockSpec((tm, D), lambda i: (i, 0))
    vec_spec = pl.BlockSpec((1, D), lambda i: (0, 0))
    return pl.pallas_call(
        functools.partial(_ln_kernel, eps=eps),
        grid=(M // tm,),
        out_shape=jax.ShapeDtypeStruct((M, D), out_dtype),
        in_specs=[row_spec, vec_spec, vec_spec],
        out_specs=row_spec,
        compiler_params=_compiler_params(("parallel",), need),
    )(x, gamma.reshape(1, D), beta.reshape(1, D))


# ----------------------------- attention (one head per grid step) -------------

def _attn_kernel(q_ref, k_ref, v_ref, m_ref, o_ref, *, scale):
    # Fold the softmax scale into q (T x Dh) instead of scaling the (T x T) scores.
    q = (q_ref[0, 0] * scale).astype(jnp.bfloat16)            # (T, Dh) bf16
    k = k_ref[0, 0]                                           # (T, Dh) bf16
    v = v_ref[0, 0]                                           # (T, Dh) bf16
    # q @ k^T without an in-kernel transpose (contract over Dh), f32 scores.
    s = jax.lax.dot_general(q, k, (((1,), (1,)), ((), ())),
                            preferred_element_type=jnp.float32)
    s = s + m_ref[0]                                          # additive padding mask (1,T)
    s = s - jnp.max(s, axis=-1, keepdims=True)
    p = jnp.exp(s)
    denom = jnp.sum(p, axis=-1, keepdims=True)
    p = p * pl.reciprocal(denom, approx=True)                 # EUP reciprocal (approx)
    o_ref[0, 0] = jnp.dot(p.astype(v.dtype), v,
                          preferred_element_type=jnp.float32).astype(o_ref.dtype)


def attention(q, k, v, mask_bias):
    """q,k,v: (B,H,T,Dh) bf16; mask_bias: (B,1,T) f32 additive; -> (B,H,T,Dh) bf16."""
    B, H, T, Dh = q.shape
    scale = 1.0 / math.sqrt(Dh)
    qkv_spec = pl.BlockSpec((1, 1, T, Dh), lambda b, h: (b, h, 0, 0))
    m_spec = pl.BlockSpec((1, 1, T), lambda b, h: (b, 0, 0))
    need = 2 * (4 * T * Dh * 2 + T * 4) + 6 * T * T * 4       # tiles + score temporaries
    return pl.pallas_call(
        functools.partial(_attn_kernel, scale=scale),
        grid=(B, H),
        out_shape=jax.ShapeDtypeStruct((B, H, T, Dh), jnp.bfloat16),
        in_specs=[qkv_spec, qkv_spec, qkv_spec, m_spec],
        out_specs=qkv_spec,
        compiler_params=_compiler_params(("parallel", "parallel"), need),
    )(q, k, v, mask_bias)


# ----------------------------- parameter init --------------------------------

def init_params(key, cfg):
    D, I, L, V, P, TY, C = (cfg["hidden"], cfg["intermediate"], cfg["layers"],
                            cfg["vocab"], cfg["max_pos"], cfg["type_vocab"],
                            cfg["num_classes"])
    std = 0.02

    def nrm(k, shape, dtype=jnp.float32):
        return (std * jax.random.normal(k, shape, dtype=jnp.float32)).astype(dtype)

    keys = iter(jax.random.split(key, 16 + 8 * L))
    p = {
        "word_emb": nrm(next(keys), (V, D)),
        "pos_emb": nrm(next(keys), (P, D)),
        "type_emb": nrm(next(keys), (TY, D)),
        "emb_ln_g": jnp.ones((D,), jnp.float32),
        "emb_ln_b": jnp.zeros((D,), jnp.float32),
        # pooler / classifier weights stay f32 (computed as XLA glue on tiny shapes)
        "pool_w": nrm(next(keys), (D, D)),
        "pool_b": jnp.zeros((D,), jnp.float32),
        "cls_w": nrm(next(keys), (D, C)),
        "cls_b": jnp.zeros((C,), jnp.float32),
        "layers": [],
    }
    for _ in range(L):
        p["layers"].append({
            # encoder weights stored in bf16 once -> no per-forward recast copies
            "qkv_w": nrm(next(keys), (D, 3 * D), jnp.bfloat16),
            "qkv_b": jnp.zeros((3 * D,), jnp.float32),
            "o_w": nrm(next(keys), (D, D), jnp.bfloat16),
            "o_b": jnp.zeros((D,), jnp.float32),
            "ln1_g": jnp.ones((D,), jnp.float32), "ln1_b": jnp.zeros((D,), jnp.float32),
            "i_w": nrm(next(keys), (D, I), jnp.bfloat16),
            "i_b": jnp.zeros((I,), jnp.float32),
            "f_w": nrm(next(keys), (I, D), jnp.bfloat16),
            "f_b": jnp.zeros((D,), jnp.float32),
            "ln2_g": jnp.ones((D,), jnp.float32), "ln2_b": jnp.zeros((D,), jnp.float32),
        })
    return p


# ----------------------------- forward pass -----------------------------------

def bert_finetune_cls_forward(params, input_ids, segment_ids, padding_mask, cfg):
    """Equivalent of BertModelFinetuneCLSLM.forward: returns (B, num_classes) logits."""
    B, T = input_ids.shape
    D, H = cfg["hidden"], cfg["heads"]
    Dh = D // H

    # --- embeddings (data-dependent gather is XLA glue), Pallas LN -> bf16 activations ---
    # TODO(synk): data-dependent embedding gather kept in plain JAX (jnp indexing).
    word = params["word_emb"][input_ids]                      # (B,T,D)
    pos = params["pos_emb"][jnp.arange(T)][None, :, :]        # (1,T,D)
    tok = params["type_emb"][segment_ids]                     # (B,T,D)
    emb = (word + pos + tok).reshape(B * T, D)
    h = layernorm(emb, params["emb_ln_g"], params["emb_ln_b"])   # (B*T, D) bf16

    # --- extended attention mask: (1 - mask) * large_negative, per batch (B,1,T) ---
    mask_bias = ((1.0 - padding_mask.astype(jnp.float32)) * (-1e9)).reshape(B, 1, T)

    def split_heads(x):   # (B*T, D) -> (B, H, T, Dh)
        return x.reshape(B, T, H, Dh).transpose(0, 2, 1, 3)

    def merge_heads(x):   # (B, H, T, Dh) -> (B*T, D)
        return x.transpose(0, 2, 1, 3).reshape(B * T, D)

    # --- encoder layers (dropout is identity in deterministic/eval forward) ---
    for lyr in params["layers"]:
        qkv = dense(h, lyr["qkv_w"], lyr["qkv_b"])            # fused QKV: (B*T, 3D) bf16
        q, k, v = qkv[:, :D], qkv[:, D:2 * D], qkv[:, 2 * D:]
        ctx = attention(split_heads(q), split_heads(k), split_heads(v), mask_bias)
        # attention-output projection with fused residual + LayerNorm epilogue
        h = dense_ln(merge_heads(ctx), lyr["o_w"], lyr["o_b"],
                     residual=h, gamma=lyr["ln1_g"], beta=lyr["ln1_b"])
        inter = dense(h, lyr["i_w"], lyr["i_b"], act="gelu")  # (B*T, I) bf16
        # FFN-output projection with fused residual + LayerNorm epilogue
        h = dense_ln(inter, lyr["f_w"], lyr["f_b"],
                     residual=h, gamma=lyr["ln2_g"], beta=lyr["ln2_b"])

    # --- pooler (dense+tanh on [CLS]) and classification head: plain XLA glue ---
    # TODO(synk): pooler/cls matmuls (N=hidden / num_classes on B rows) left to XLA;
    #             lane widths are far below 128 so a Pallas kernel would be pure overhead.
    cls_tok = h.reshape(B, T, D)[:, 0, :].astype(jnp.float32)     # (B, D)
    pooled = jnp.tanh(cls_tok @ params["pool_w"] + params["pool_b"])
    logits = pooled @ params["cls_w"] + params["cls_b"]           # (B, C) f32
    return logits


# ----------------------------- main -------------------------------------------

if __name__ == "__main__":
    cfg = dict(vocab=100, max_pos=32, type_vocab=2,
               hidden=32, heads=4, intermediate=128, layers=2,
               num_classes=3)
    B, T = 2, 8

    key = jax.random.PRNGKey(0)
    k_param, k_ids = jax.random.split(key)
    params = init_params(k_param, cfg)

    input_ids = jax.random.randint(k_ids, (B, T), 0, cfg["vocab"], dtype=jnp.int32)
    # sentence A = first 5 tokens, sentence B = rest; last 2 tokens of batch 1 are padding.
    segment_ids = jnp.concatenate(
        [jnp.zeros((B, 5), jnp.int32), jnp.ones((B, T - 5), jnp.int32)], axis=1)
    padding_mask = jnp.ones((B, T), jnp.int32).at[1, -2:].set(0)
    segment_ids = segment_ids * padding_mask  # segment 0 at padded positions

    fwd = jax.jit(functools.partial(bert_finetune_cls_forward, cfg=cfg))
    logits = fwd(params, input_ids, segment_ids, padding_mask)
    logits = jax.block_until_ready(logits)
    assert logits.shape == (B, cfg["num_classes"]) and logits.dtype == jnp.float32
    assert bool(jnp.all(jnp.isfinite(logits)))
    print("KERNEL_OK")
</pallas_src>

<mosaic_0001>
module attributes {stable_mosaic.version = 11 : i64} {
  func.func @_ln_kernel(%arg0: i32, %arg1: memref<16x32xf32, #tpu.memory_space<vmem>>, %arg2: memref<1x32xf32, #tpu.memory_space<vmem>>, %arg3: memref<1x32xf32, #tpu.memory_space<vmem>>, %arg4: memref<16x32xbf16, #tpu.memory_space<vmem>>) attributes {dimension_semantics = [#tpu.dimension_semantics<parallel>], iteration_bounds = array<i64: 1>, scalar_prefetch = 0 : i64, scratch_operands = 0 : i64, tpu.core_type = #tpu.core_type<tc>, window_params = [{transform_indices = @transform_0, window_bounds = array<i64: 16, 32>}, {pipeline_mode = #tpu.pipeline_mode<synchronous>, transform_indices = @transform_1, window_bounds = array<i64: 1, 32>}, {pipeline_mode = #tpu.pipeline_mode<synchronous>, transform_indices = @transform_2, window_bounds = array<i64: 1, 32>}, {transform_indices = @transform_3, window_bounds = array<i64: 16, 32>}]} {
    %c0 = arith.constant 0 : index
    %c0_0 = arith.constant 0 : index
    %0 = vector.load %arg1[%c0, %c0_0] : memref<16x32xf32, #tpu.memory_space<vmem>>, vector<16x32xf32>
    %cst = arith.constant dense<0.000000e+00> : vector<16xf32>
    %1 = vector.multi_reduction <add>, %0, %cst [1] : vector<16x32xf32> to vector<16xf32>
    %2 = vector.shape_cast %1 : vector<16xf32> to vector<16x1xf32>
    %cst_1 = arith.constant 3.200000e+01 : f32
    %3 = vector.broadcast %cst_1 : f32 to vector<16x1xf32>
    %4 = arith.divf %2, %3 : vector<16x1xf32>
    %5 = vector.broadcast %4 : vector<16x1xf32> to vector<16x32xf32>
    %6 = arith.subf %0, %5 : vector<16x32xf32>
    %7 = arith.mulf %6, %6 : vector<16x32xf32>
    %cst_2 = arith.constant dense<0.000000e+00> : vector<16xf32>
    %8 = vector.multi_reduction <add>, %7, %cst_2 [1] : vector<16x32xf32> to vector<16xf32>
    %9 = vector.shape_cast %8 : vector<16xf32> to vector<16x1xf32>
    %cst_3 = arith.constant 3.200000e+01 : f32
    %10 = vector.broadcast %cst_3 : f32 to vector<16x1xf32>
    %11 = arith.divf %9, %10 : vector<16x1xf32>
    %cst_4 = arith.constant 9.99999996E-13 : f32
    %12 = vector.broadcast %cst_4 : f32 to vector<16x1xf32>
    %13 = arith.addf %11, %12 : vector<16x1xf32>
    %14 = math.rsqrt %13 : vector<16x1xf32>
    %15 = vector.broadcast %14 : vector<16x1xf32> to vector<16x32xf32>
    %16 = arith.mulf %6, %15 : vector<16x32xf32>
    %c0_5 = arith.constant 0 : index
    %c0_6 = arith.constant 0 : index
    %17 = vector.load %arg2[%c0_5, %c0_6] : memref<1x32xf32, #tpu.memory_space<vmem>>, vector<1x32xf32>
    %18 = vector.broadcast %17 : vector<1x32xf32> to vector<16x32xf32>
    %19 = arith.mulf %16, %18 : vector<16x32xf32>
    %c0_7 = arith.constant 0 : index
    %c0_8 = arith.constant 0 : index
    %20 = vector.load %arg3[%c0_7, %c0_8] : memref<1x32xf32, #tpu.memory_space<vmem>>, vector<1x32xf32>
    %21 = vector.broadcast %20 : vector<1x32xf32> to vector<16x32xf32>
    %22 = arith.addf %19, %21 : vector<16x32xf32>
    %23 = arith.truncf %22 : vector<16x32xf32> to vector<16x32xbf16>
    %c0_9 = arith.constant 0 : index
    %c0_10 = arith.constant 0 : index
    %24 = vector.load %arg4[%c0_9, %c0_10] : memref<16x32xbf16, #tpu.memory_space<vmem>>, vector<16x32xbf16>
    tpu.vector_store %arg4[%c0_9, %c0_10], %23 {strides = array<i32>} : memref<16x32xbf16, #tpu.memory_space<vmem>>, vector<16x32xbf16>,
    return
  }
  func.func @transform_0(%arg0: i32) -> (i32, i32) {
    %c0_i32 = arith.constant 0 : i32
    %c0_i32_0 = arith.constant 0 : i32
    return %arg0, %c0_i32 : i32, i32
  }
  func.func @transform_1(%arg0: i32) -> (i32, i32) {
    %c0_i32 = arith.constant 0 : i32
    %c0_i32_0 = arith.constant 0 : i32
    %c0_i32_1 = arith.constant 0 : i32
    return %c0_i32, %c0_i32_0 : i32, i32
  }
  func.func @transform_2(%arg0: i32) -> (i32, i32) {
    %c0_i32 = arith.constant 0 : i32
    %c0_i32_0 = arith.constant 0 : i32
    %c0_i32_1 = arith.constant 0 : i32
    return %c0_i32, %c0_i32_0 : i32, i32
  }
  func.func @transform_3(%arg0: i32) -> (i32, i32) {
    %c0_i32 = arith.constant 0 : i32
    %c0_i32_0 = arith.constant 0 : i32
    return %arg0, %c0_i32 : i32, i32
  }
}

module attributes {stable_mosaic.version = 11 : i64} {
  func.func @_dense_kernel(%arg0: i32, %arg1: i32, %arg2: i32, %arg3: memref<16x32xbf16, #tpu.memory_space<vmem>>, %arg4: memref<32x96xbf16, #tpu.memory_space<vmem>>, %arg5: memref<1x96xf32, #tpu.memory_space<vmem>>, %arg6: memref<16x96xbf16, #tpu.memory_space<vmem>>, %arg7: memref<16x96xf32, #tpu.memory_space<vmem>>) attributes {dimension_semantics = [#tpu.dimension_semantics<parallel>, #tpu.dimension_semantics<parallel>, #tpu.dimension_semantics<arbitrary>], iteration_bounds = array<i64: 1, 1, 1>, scalar_prefetch = 0 : i64, scratch_operands = 1 : i64, tpu.core_type = #tpu.core_type<tc>, window_params = [{transform_indices = @transform_0, window_bounds = array<i64: 16, 32>}, {transform_indices = @transform_1, window_bounds = array<i64: 32, 96>}, {transform_indices = @transform_2, window_bounds = array<i64: 1, 96>}, {transform_indices = @transform_3, window_bounds = array<i64: 16, 96>}]} {
    %c0_i32 = arith.constant 0 : i32
    %0 = arith.cmpi eq, %arg2, %c0_i32 : i32
    %1 = arith.extui %0 : i1 to i32
    %c0_i32_0 = arith.constant 0 : i32
    %2 = arith.cmpi ne, %1, %c0_i32_0 : i32
    scf.if %2 {
      %cst_10 = arith.constant 0.000000e+00 : f32
      %12 = vector.broadcast %cst_10 : f32 to vector<16x96xf32>
      %c0_11 = arith.constant 0 : index
      %c0_12 = arith.constant 0 : index
      %13 = vector.load %arg7[%c0_11, %c0_12] : memref<16x96xf32, #tpu.memory_space<vmem>>, vector<16x96xf32>
      tpu.vector_store %arg7[%c0_11, %c0_12], %12 {strides = array<i32>} : memref<16x96xf32, #tpu.memory_space<vmem>>, vector<16x96xf32>,
    } else {
    }
    %c0 = arith.constant 0 : index
    %c0_1 = arith.constant 0 : index
    %3 = vector.load %arg7[%c0, %c0_1] : memref<16x96xf32, #tpu.memory_space<vmem>>, vector<16x96xf32>
    %c0_2 = arith.constant 0 : index
    %c0_3 = arith.constant 0 : index
    %4 = vector.load %arg3[%c0_2, %c0_3] : memref<16x32xbf16, #tpu.memory_space<vmem>>, vector<16x32xbf16>
    %c0_4 = arith.constant 0 : index
    %c0_5 = arith.constant 0 : index
    %5 = vector.load %arg4[%c0_4, %c0_5] : memref<32x96xbf16, #tpu.memory_space<vmem>>, vector<32x96xbf16>
    %cst = arith.constant dense<0.000000e+00> : vector<16x96xf32>
    %6 = tpu.matmul %4, %5, %cst {dimension_numbers = #tpu.dot_dimension_numbers<[1], [0], [0], [1], [0, 0, 1, 1], [], []>} : vector<16x32xbf16>, vector<32x96xbf16>, vector<16x96xf32> -> vector<16x96xf32>
    %7 = arith.addf %3, %6 : vector<16x96xf32>
    %c0_6 = arith.constant 0 : index
    %c0_7 = arith.constant 0 : index
    %8 = vector.load %arg7[%c0_6, %c0_7] : memref<16x96xf32, #tpu.memory_space<vmem>>, vector<16x96xf32>
    tpu.vector_store %arg7[%c0_6, %c0_7], %7 {strides = array<i32>} : memref<16x96xf32, #tpu.memory_space<vmem>>, vector<16x96xf32>,
    %c0_i32_8 = arith.constant 0 : i32
    %9 = arith.cmpi eq, %arg2, %c0_i32_8 : i32
    %10 = arith.extui %9 : i1 to i32
    %c0_i32_9 = arith.constant 0 : i32
    %11 = arith.cmpi ne, %10, %c0_i32_9 : i32
    scf.if %11 {
      %c0_10 = arith.constant 0 : index
      %c0_11 = arith.constant 0 : index
      %12 = vector.load %arg7[%c0_10, %c0_11] : memref<16x96xf32, #tpu.memory_space<vmem>>, vector<16x96xf32>
      %c0_12 = arith.constant 0 : index
      %c0_13 = arith.constant 0 : index
      %13 = vector.load %arg5[%c0_12, %c0_13] : memref<1x96xf32, #tpu.memory_space<vmem>>, vector<1x96xf32>
      %14 = vector.broadcast %13 : vector<1x96xf32> to vector<16x96xf32>
      %15 = arith.addf %12, %14 : vector<16x96xf32>
      %16 = arith.truncf %15 : vector<16x96xf32> to vector<16x96xbf16>
      %c0_14 = arith.constant 0 : index
      %c0_15 = arith.constant 0 : index
      %17 = vector.load %arg6[%c0_14, %c0_15] : memref<16x96xbf16, #tpu.memory_space<vmem>>, vector<16x96xbf16>
      tpu.vector_store %arg6[%c0_14, %c0_15], %16 {strides = array<i32>} : memref<16x96xbf16, #tpu.memory_space<vmem>>, vector<16x96xbf16>,
    } else {
    }
    return
  }
  func.func @transform_0(%arg0: i32, %arg1: i32, %arg2: i32) -> (i32, i32) {
    %c0_i32 = arith.constant 0 : i32
    return %arg0, %arg2 : i32, i32
  }
  func.func @transform_1(%arg0: i32, %arg1: i32, %arg2: i32) -> (i32, i32) {
    %c0_i32 = arith.constant 0 : i32
    return %arg2, %arg1 : i32, i32
  }
  func.func @transform_2(%arg0: i32, %arg1: i32, %arg2: i32) -> (i32, i32) {
    %c0_i32 = arith.constant 0 : i32
    %c0_i32_0 = arith.constant 0 : i32
    return %c0_i32, %arg1 : i32, i32
  }
  func.func @transform_3(%arg0: i32, %arg1: i32, %arg2: i32) -> (i32, i32) {
    %c0_i32 = arith.constant 0 : i32
    return %arg0, %arg1 : i32, i32
  }
}

module attributes {stable_mosaic.version = 11 : i64} {
  func.func @_attn_kernel(%arg0: i32, %arg1: i32, %arg2: memref<1x1x8x8xbf16, #tpu.memory_space<vmem>>, %arg3: memref<1x1x8x8xbf16, #tpu.memory_space<vmem>>, %arg4: memref<1x1x8x8xbf16, #tpu.memory_space<vmem>>, %arg5: memref<1x1x8xf32, #tpu.memory_space<vmem>>, %arg6: memref<1x1x8x8xbf16, #tpu.memory_space<vmem>>) attributes {dimension_semantics = [#tpu.dimension_semantics<parallel>, #tpu.dimension_semantics<parallel>], iteration_bounds = array<i64: 2, 4>, scalar_prefetch = 0 : i64, scratch_operands = 0 : i64, tpu.core_type = #tpu.core_type<tc>, window_params = [{transform_indices = @transform_0, window_bounds = array<i64: 1, 1, 8, 8>}, {transform_indices = @transform_1, window_bounds = array<i64: 1, 1, 8, 8>}, {transform_indices = @transform_2, window_bounds = array<i64: 1, 1, 8, 8>}, {transform_indices = @transform_3, window_bounds = array<i64: 1, 1, 8>}, {transform_indices = @transform_4, window_bounds = array<i64: 1, 1, 8, 8>}]} {
    %c0 = arith.constant 0 : index
    %c0_0 = arith.constant 0 : index
    %c0_1 = arith.constant 0 : index
    %c0_2 = arith.constant 0 : index
    %0 = vector.load %arg2[%c0, %c0_0, %c0_1, %c0_2] : memref<1x1x8x8xbf16, #tpu.memory_space<vmem>>, vector<1x1x8x8xbf16>
    %1 = vector.shape_cast %0 : vector<1x1x8x8xbf16> to vector<8x8xbf16>
    %cst = arith.constant 3.535160e-01 : bf16
    %2 = vector.broadcast %cst : bf16 to vector<8x8xbf16>
    %3 = arith.mulf %1, %2 : vector<8x8xbf16>
    %c0_3 = arith.constant 0 : index
    %c0_4 = arith.constant 0 : index
    %c0_5 = arith.constant 0 : index
    %c0_6 = arith.constant 0 : index
    %4 = vector.load %arg3[%c0_3, %c0_4, %c0_5, %c0_6] : memref<1x1x8x8xbf16, #tpu.memory_space<vmem>>, vector<1x1x8x8xbf16>
    %5 = vector.shape_cast %4 : vector<1x1x8x8xbf16> to vector<8x8xbf16>
    %c0_7 = arith.constant 0 : index
    %c0_8 = arith.constant 0 : index
    %c0_9 = arith.constant 0 : index
    %c0_10 = arith.constant 0 : index
    %6 = vector.load %arg4[%c0_7, %c0_8, %c0_9, %c0_10] : memref<1x1x8x8xbf16, #tpu.memory_space<vmem>>, vector<1x1x8x8xbf16>
    %7 = vector.shape_cast %6 : vector<1x1x8x8xbf16> to vector<8x8xbf16>
    %cst_11 = arith.constant dense<0.000000e+00> : vector<8x8xf32>
    %8 = tpu.matmul %3, %5, %cst_11 {dimension_numbers = #tpu.dot_dimension_numbers<[1], [1], [0], [0], [0, 0, 1, 0], [], []>} : vector<8x8xbf16>, vector<8x8xbf16>, vector<8x8xf32> -> vector<8x8xf32>
    %c0_12 = arith.constant 0 : index
    %c0_13 = arith.constant 0 : index
    %c0_14 = arith.constant 0 : index
    %9 = vector.load %arg5[%c0_12, %c0_13, %c0_14] : memref<1x1x8xf32, #tpu.memory_space<vmem>>, vector<1x1x8xf32>
    %10 = vector.shape_cast %9 : vector<1x1x8xf32> to vector<1x8xf32>
    %11 = vector.broadcast %10 : vector<1x8xf32> to vector<8x8xf32>
    %12 = arith.addf %8, %11 : vector<8x8xf32>
    %cst_15 = arith.constant dense<0xFF800000> : vector<8xf32>
    %13 = vector.multi_reduction <maximumf>, %12, %cst_15 [1] : vector<8x8xf32> to vector<8xf32>
    %14 = vector.shape_cast %13 : vector<8xf32> to vector<8x1xf32>
    %15 = vector.broadcast %14 : vector<8x1xf32> to vector<8x8xf32>
    %16 = arith.subf %12, %15 : vector<8x8xf32>
    %17 = math.exp %16 : vector<8x8xf32>
    %cst_16 = arith.constant dense<0.000000e+00> : vector<8xf32>
    %18 = vector.multi_reduction <add>, %17, %cst_16 [1] : vector<8x8xf32> to vector<8xf32>
    %19 = vector.shape_cast %18 : vector<8xf32> to vector<8x1xf32>
    %20 = tpu.reciprocal %19 {approx = true} : vector<8x1xf32> -> vector<8x1xf32>
    %21 = vector.broadcast %20 : vector<8x1xf32> to vector<8x8xf32>
    %22 = arith.mulf %17, %21 : vector<8x8xf32>
    %23 = arith.truncf %22 : vector<8x8xf32> to vector<8x8xbf16>
    %cst_17 = arith.constant dense<0.000000e+00> : vector<8x8xf32>
    %24 = tpu.matmul %23, %7, %cst_17 {dimension_numbers = #tpu.dot_dimension_numbers<[1], [0], [0], [1], [0, 0, 1, 1], [], []>} : vector<8x8xbf16>, vector<8x8xbf16>, vector<8x8xf32> -> vector<8x8xf32>
    %25 = arith.truncf %24 : vector<8x8xf32> to vector<8x8xbf16>
    %c0_18 = arith.constant 0 : index
    %c0_19 = arith.constant 0 : index
    %c0_20 = arith.constant 0 : index
    %c0_21 = arith.constant 0 : index
    %26 = vector.load %arg6[%c0_18, %c0_19, %c0_20, %c0_21] : memref<1x1x8x8xbf16, #tpu.memory_space<vmem>>, vector<1x1x8x8xbf16>
    %27 = vector.shape_cast %26 : vector<1x1x8x8xbf16> to vector<8x8xbf16>
    %28 = vector.shape_cast %25 : vector<8x8xbf16> to vector<1x1x8x8xbf16>
    tpu.vector_store %arg6[%c0_18, %c0_19, %c0_20, %c0_21], %28 {strides = array<i32>} : memref<1x1x8x8xbf16, #tpu.memory_space<vmem>>, vector<1x1x8x8xbf16>,
    return
  }
  func.func @transform_0(%arg0: i32, %arg1: i32) -> (i32, i32, i32, i32) {
    %c0_i32 = arith.constant 0 : i32
    %c0_i32_0 = arith.constant 0 : i32
    %c0_i32_1 = arith.constant 0 : i32
    return %arg0, %arg1, %c0_i32, %c0_i32_0 : i32, i32, i32, i32
  }
  func.func @transform_1(%arg0: i32, %arg1: i32) -> (i32, i32, i32, i32) {
    %c0_i32 = arith.constant 0 : i32
    %c0_i32_0 = arith.constant 0 : i32
    %c0_i32_1 = arith.constant 0 : i32
    return %arg0, %arg1, %c0_i32, %c0_i32_0 : i32, i32, i32, i32
  }
  func.func @transform_2(%arg0: i32, %arg1: i32) -> (i32, i32, i32, i32) {
    %c0_i32 = arith.constant 0 : i32
    %c0_i32_0 = arith.constant 0 : i32
    %c0_i32_1 = arith.constant 0 : i32
    return %arg0, %arg1, %c0_i32, %c0_i32_0 : i32, i32, i32, i32
  }
  func.func @transform_3(%arg0: i32, %arg1: i32) -> (i32, i32, i32) {
    %c0_i32 = arith.constant 0 : i32
    %c0_i32_0 = arith.constant 0 : i32
    %c0_i32_1 = arith.constant 0 : i32
    return %arg0, %c0_i32, %c0_i32_0 : i32, i32, i32
  }
  func.func @transform_4(%arg0: i32, %arg1: i32) -> (i32, i32, i32, i32) {
    %c0_i32 = arith.constant 0 : i32
    %c0_i32_0 = arith.constant 0 : i32
    %c0_i32_1 = arith.constant 0 : i32
    return %arg0, %arg1, %c0_i32, %c0_i32_0 : i32, i32, i32, i32
  }
}

module attributes {stable_mosaic.version = 11 : i64} {
  func.func @_dense_ln_kernel(%arg0: i32, %arg1: i32, %arg2: memref<16x32xbf16, #tpu.memory_space<vmem>>, %arg3: memref<32x32xbf16, #tpu.memory_space<vmem>>, %arg4: memref<1x32xf32, #tpu.memory_space<vmem>>, %arg5: memref<16x32xbf16, #tpu.memory_space<vmem>>, %arg6: memref<1x32xf32, #tpu.memory_space<vmem>>, %arg7: memref<1x32xf32, #tpu.memory_space<vmem>>, %arg8: memref<16x32xbf16, #tpu.memory_space<vmem>>, %arg9: memref<16x32xf32, #tpu.memory_space<vmem>>) attributes {dimension_semantics = [#tpu.dimension_semantics<parallel>, #tpu.dimension_semantics<arbitrary>], iteration_bounds = array<i64: 1, 1>, scalar_prefetch = 0 : i64, scratch_operands = 1 : i64, tpu.core_type = #tpu.core_type<tc>, window_params = [{transform_indices = @transform_0, window_bounds = array<i64: 16, 32>}, {transform_indices = @transform_1, window_bounds = array<i64: 32, 32>}, {pipeline_mode = #tpu.pipeline_mode<synchronous>, transform_indices = @transform_2, window_bounds = array<i64: 1, 32>}, {transform_indices = @transform_3, window_bounds = array<i64: 16, 32>}, {pipeline_mode = #tpu.pipeline_mode<synchronous>, transform_indices = @transform_4, window_bounds = array<i64: 1, 32>}, {pipeline_mode = #tpu.pipeline_mode<synchronous>, transform_indices = @transform_5, window_bounds = array<i64: 1, 32>}, {transform_indices = @transform_6, window_bounds = array<i64: 16, 32>}]} {
    %c0_i32 = arith.constant 0 : i32
    %0 = arith.cmpi eq, %arg1, %c0_i32 : i32
    %1 = arith.extui %0 : i1 to i32
    %c0_i32_0 = arith.constant 0 : i32
    %2 = arith.cmpi ne, %1, %c0_i32_0 : i32
    scf.if %2 {
      %cst_10 = arith.constant 0.000000e+00 : f32
      %12 = vector.broadcast %cst_10 : f32 to vector<16x32xf32>
      %c0_11 = arith.constant 0 : index
      %c0_12 = arith.constant 0 : index
      %13 = vector.load %arg9[%c0_11, %c0_12] : memref<16x32xf32, #tpu.memory_space<vmem>>, vector<16x32xf32>
      tpu.vector_store %arg9[%c0_11, %c0_12], %12 {strides = array<i32>} : memref<16x32xf32, #tpu.memory_space<vmem>>, vector<16x32xf32>,
    } else {
    }
    %c0 = arith.constant 0 : index
    %c0_1 = arith.constant 0 : index
    %3 = vector.load %arg9[%c0, %c0_1] : memref<16x32xf32, #tpu.memory_space<vmem>>, vector<16x32xf32>
    %c0_2 = arith.constant 0 : index
    %c0_3 = arith.constant 0 : index
    %4 = vector.load %arg2[%c0_2, %c0_3] : memref<16x32xbf16, #tpu.memory_space<vmem>>, vector<16x32xbf16>
    %c0_4 = arith.constant 0 : index
    %c0_5 = arith.constant 0 : index
    %5 = vector.load %arg3[%c0_4, %c0_5] : memref<32x32xbf16, #tpu.memory_space<vmem>>, vector<32x32xbf16>
    %cst = arith.constant dense<0.000000e+00> : vector<16x32xf32>
    %6 = tpu.matmul %4, %5, %cst {dimension_numbers = #tpu.dot_dimension_numbers<[1], [0], [0], [1], [0, 0, 1, 1], [], []>} : vector<16x32xbf16>, vector<32x32xbf16>, vector<16x32xf32> -> vector<16x32xf32>
    %7 = arith.addf %3, %6 : vector<16x32xf32>
    %c0_6 = arith.constant 0 : index
    %c0_7 = arith.constant 0 : index
    %8 = vector.load %arg9[%c0_6, %c0_7] : memref<16x32xf32, #tpu.memory_space<vmem>>, vector<16x32xf32>
    tpu.vector_store %arg9[%c0_6, %c0_7], %7 {strides = array<i32>} : memref<16x32xf32, #tpu.memory_space<vmem>>, vector<16x32xf32>,
    %c0_i32_8 = arith.constant 0 : i32
    %9 = arith.cmpi eq, %arg1, %c0_i32_8 : i32
    %10 = arith.extui %9 : i1 to i32
    %c0_i32_9 = arith.constant 0 : i32
    %11 = arith.cmpi ne, %10, %c0_i32_9 : i32
    scf.if %11 {
      %c0_10 = arith.constant 0 : index
      %c0_11 = arith.constant 0 : index
      %12 = vector.load %arg9[%c0_10, %c0_11] : memref<16x32xf32, #tpu.memory_space<vmem>>, vector<16x32xf32>
      %c0_12 = arith.constant 0 : index
      %c0_13 = arith.constant 0 : index
      %13 = vector.load %arg4[%c0_12, %c0_13] : memref<1x32xf32, #tpu.memory_space<vmem>>, vector<1x32xf32>
      %14 = vector.broadcast %13 : vector<1x32xf32> to vector<16x32xf32>
      %15 = arith.addf %12, %14 : vector<16x32xf32>
      %c0_14 = arith.constant 0 : index
      %c0_15 = arith.constant 0 : index
      %16 = vector.load %arg5[%c0_14, %c0_15] : memref<16x32xbf16, #tpu.memory_space<vmem>>, vector<16x32xbf16>
      %17 = arith.extf %16 : vector<16x32xbf16> to vector<16x32xf32>
      %18 = arith.addf %15, %17 : vector<16x32xf32>
      %cst_16 = arith.constant dense<0.000000e+00> : vector<16xf32>
      %19 = vector.multi_reduction <add>, %18, %cst_16 [1] : vector<16x32xf32> to vector<16xf32>
      %20 = vector.shape_cast %19 : vector<16xf32> to vector<16x1xf32>
      %cst_17 = arith.constant 3.200000e+01 : f32
      %21 = vector.broadcast %cst_17 : f32 to vector<16x1xf32>
      %22 = arith.divf %20, %21 : vector<16x1xf32>
      %23 = vector.broadcast %22 : vector<16x1xf32> to vector<16x32xf32>
      %24 = arith.subf %18, %23 : vector<16x32xf32>
      %25 = arith.mulf %24, %24 : vector<16x32xf32>
      %cst_18 = arith.constant dense<0.000000e+00> : vector<16xf32>
      %26 = vector.multi_reduction <add>, %25, %cst_18 [1] : vector<16x32xf32> to vector<16xf32>
      %27 = vector.shape_cast %26 : vector<16xf32> to vector<16x1xf32>
      %cst_19 = arith.constant 3.200000e+01 : f32
      %28 = vector.broadcast %cst_19 : f32 to vector<16x1xf32>
      %29 = arith.divf %27, %28 : vector<16x1xf32>
      %cst_20 = arith.constant 9.99999996E-13 : f32
      %30 = vector.broadcast %cst_20 : f32 to vector<16x1xf32>
      %31 = arith.addf %29, %30 : vector<16x1xf32>
      %32 = math.rsqrt %31 : vector<16x1xf32>
      %33 = vector.broadcast %32 : vector<16x1xf32> to vector<16x32xf32>
      %34 = arith.mulf %24, %33 : vector<16x32xf32>
      %c0_21 = arith.constant 0 : index
      %c0_22 = arith.constant 0 : index
      %35 = vector.load %arg6[%c0_21, %c0_22] : memref<1x32xf32, #tpu.memory_space<vmem>>, vector<1x32xf32>
      %36 = vector.broadcast %35 : vector<1x32xf32> to vector<16x32xf32>
      %37 = arith.mulf %34, %36 : vector<16x32xf32>
      %c0_23 = arith.constant 0 : index
      %c0_24 = arith.constant 0 : index
      %38 = vector.load %arg7[%c0_23, %c0_24] : memref<1x32xf32, #tpu.memory_space<vmem>>, vector<1x32xf32>
      %39 = vector.broadcast %38 : vector<1x32xf32> to vector<16x32xf32>
      %40 = arith.addf %37, %39 : vector<16x32xf32>
      %41 = arith.truncf %40 : vector<16x32xf32> to vector<16x32xbf16>
      %c0_25 = arith.constant 0 : index
      %c0_26 = arith.constant 0 : index
      %42 = vector.load %arg8[%c0_25, %c0_26] : memref<16x32xbf16, #tpu.memory_space<vmem>>, vector<16x32xbf16>
      tpu.vector_store %arg8[%c0_25, %c0_26], %41 {strides = array<i32>} : memref<16x32xbf16, #tpu.memory_space<vmem>>, vector<16x32xbf16>,
    } else {
    }
    return
  }
  func.func @transform_0(%arg0: i32, %arg1: i32) -> (i32, i32) {
    %c0_i32 = arith.constant 0 : i32
    return %arg0, %arg1 : i32, i32
  }
  func.func @transform_1(%arg0: i32, %arg1: i32) -> (i32, i32) {
    %c0_i32 = arith.constant 0 : i32
    %c0_i32_0 = arith.constant 0 : i32
    return %arg1, %c0_i32 : i32, i32
  }
  func.func @transform_2(%arg0: i32, %arg1: i32) -> (i32, i32) {
    %c0_i32 = arith.constant 0 : i32
    %c0_i32_0 = arith.constant 0 : i32
    %c0_i32_1 = arith.constant 0 : i32
    return %c0_i32, %c0_i32_0 : i32, i32
  }
  func.func @transform_3(%arg0: i32, %arg1: i32) -> (i32, i32) {
    %c0_i32 = arith.constant 0 : i32
    %c0_i32_0 = arith.constant 0 : i32
    return %arg0, %c0_i32 : i32, i32
  }
  func.func @transform_4(%arg0: i32, %arg1: i32) -> (i32, i32) {
    %c0_i32 = arith.constant 0 : i32
    %c0_i32_0 = arith.constant 0 : i32
    %c0_i32_1 = arith.constant 0 : i32
    return %c0_i32, %c0_i32_0 : i32, i32
  }
  func.func @transform_5(%arg0: i32, %arg1: i32) -> (i32, i32) {
    %c0_i32 = arith.constant 0 : i32
    %c0_i32_0 = arith.constant 0 : i32
    %c0_i32_1 = arith.constant 0 : i32
    return %c0_i32, %c0_i32_0 : i32, i32
  }
  func.func @transform_6(%arg0: i32, %arg1: i32) -> (i32, i32) {
    %c0_i32 = arith.constant 0 : i32
    %c0_i32_0 = arith.constant 0 : i32
    return %arg0, %c0_i32 : i32, i32
  }
}

module attributes {stable_mosaic.version = 11 : i64} {
  func.func @_dense_kernel(%arg0: i32, %arg1: i32, %arg2: i32, %arg3: memref<16x32xbf16, #tpu.memory_space<vmem>>, %arg4: memref<32x128xbf16, #tpu.memory_space<vmem>>, %arg5: memref<1x128xf32, #tpu.memory_space<vmem>>, %arg6: memref<16x128xbf16, #tpu.memory_space<vmem>>, %arg7: memref<16x128xf32, #tpu.memory_space<vmem>>) attributes {dimension_semantics = [#tpu.dimension_semantics<parallel>, #tpu.dimension_semantics<parallel>, #tpu.dimension_semantics<arbitrary>], iteration_bounds = array<i64: 1, 1, 1>, scalar_prefetch = 0 : i64, scratch_operands = 1 : i64, tpu.core_type = #tpu.core_type<tc>, window_params = [{transform_indices = @transform_0, window_bounds = array<i64: 16, 32>}, {transform_indices = @transform_1, window_bounds = array<i64: 32, 128>}, {transform_indices = @transform_2, window_bounds = array<i64: 1, 128>}, {transform_indices = @transform_3, window_bounds = array<i64: 16, 128>}]} {
    %c0_i32 = arith.constant 0 : i32
    %0 = arith.cmpi eq, %arg2, %c0_i32 : i32
    %1 = arith.extui %0 : i1 to i32
    %c0_i32_0 = arith.constant 0 : i32
    %2 = arith.cmpi ne, %1, %c0_i32_0 : i32
    scf.if %2 {
      %cst_10 = arith.constant 0.000000e+00 : f32
      %12 = vector.broadcast %cst_10 : f32 to vector<16x128xf32>
      %c0_11 = arith.constant 0 : index
      %c0_12 = arith.constant 0 : index
      %13 = vector.load %arg7[%c0_11, %c0_12] : memref<16x128xf32, #tpu.memory_space<vmem>>, vector<16x128xf32>
      tpu.vector_store %arg7[%c0_11, %c0_12], %12 {strides = array<i32>} : memref<16x128xf32, #tpu.memory_space<vmem>>, vector<16x128xf32>,
    } else {
    }
    %c0 = arith.constant 0 : index
    %c0_1 = arith.constant 0 : index
    %3 = vector.load %arg7[%c0, %c0_1] : memref<16x128xf32, #tpu.memory_space<vmem>>, vector<16x128xf32>
    %c0_2 = arith.constant 0 : index
    %c0_3 = arith.constant 0 : index
    %4 = vector.load %arg3[%c0_2, %c0_3] : memref<16x32xbf16, #tpu.memory_space<vmem>>, vector<16x32xbf16>
    %c0_4 = arith.constant 0 : index
    %c0_5 = arith.constant 0 : index
    %5 = vector.load %arg4[%c0_4, %c0_5] : memref<32x128xbf16, #tpu.memory_space<vmem>>, vector<32x128xbf16>
    %cst = arith.constant dense<0.000000e+00> : vector<16x128xf32>
    %6 = tpu.matmul %4, %5, %cst {dimension_numbers = #tpu.dot_dimension_numbers<[1], [0], [0], [1], [0, 0, 1, 1], [], []>} : vector<16x32xbf16>, vector<32x128xbf16>, vector<16x128xf32> -> vector<16x128xf32>
    %7 = arith.addf %3, %6 : vector<16x128xf32>
    %c0_6 = arith.constant 0 : index
    %c0_7 = arith.constant 0 : index
    %8 = vector.load %arg7[%c0_6, %c0_7] : memref<16x128xf32, #tpu.memory_space<vmem>>, vector<16x128xf32>
    tpu.vector_store %arg7[%c0_6, %c0_7], %7 {strides = array<i32>} : memref<16x128xf32, #tpu.memory_space<vmem>>, vector<16x128xf32>,
    %c0_i32_8 = arith.constant 0 : i32
    %9 = arith.cmpi eq, %arg2, %c0_i32_8 : i32
    %10 = arith.extui %9 : i1 to i32
    %c0_i32_9 = arith.constant 0 : i32
    %11 = arith.cmpi ne, %10, %c0_i32_9 : i32
    scf.if %11 {
      %c0_10 = arith.constant 0 : index
      %c0_11 = arith.constant 0 : index
      %12 = vector.load %arg7[%c0_10, %c0_11] : memref<16x128xf32, #tpu.memory_space<vmem>>, vector<16x128xf32>
      %c0_12 = arith.constant 0 : index
      %c0_13 = arith.constant 0 : index
      %13 = vector.load %arg5[%c0_12, %c0_13] : memref<1x128xf32, #tpu.memory_space<vmem>>, vector<1x128xf32>
      %14 = vector.broadcast %13 : vector<1x128xf32> to vector<16x128xf32>
      %15 = arith.addf %12, %14 : vector<16x128xf32>
      %cst_14 = arith.constant 5.000000e-01 : f32
      %16 = vector.broadcast %cst_14 : f32 to vector<16x128xf32>
      %17 = arith.mulf %16, %15 : vector<16x128xf32>
      %cst_15 = arith.constant 0.707106769 : f32
      %18 = vector.broadcast %cst_15 : f32 to vector<16x128xf32>
      %19 = arith.mulf %15, %18 : vector<16x128xf32>
      %20 = math.erf %19 : vector<16x128xf32>
      %cst_16 = arith.constant 1.000000e+00 : f32
      %21 = vector.broadcast %cst_16 : f32 to vector<16x128xf32>
      %22 = arith.addf %21, %20 : vector<16x128xf32>
      %23 = arith.mulf %17, %22 : vector<16x128xf32>
      %24 = arith.truncf %23 : vector<16x128xf32> to vector<16x128xbf16>
      %c0_17 = arith.constant 0 : index
      %c0_18 = arith.constant 0 : index
      %25 = vector.load %arg6[%c0_17, %c0_18] : memref<16x128xbf16, #tpu.memory_space<vmem>>, vector<16x128xbf16>
      tpu.vector_store %arg6[%c0_17, %c0_18], %24 {strides = array<i32>} : memref<16x128xbf16, #tpu.memory_space<vmem>>, vector<16x128xbf16>,
    } else {
    }
    return
  }
  func.func @transform_0(%arg0: i32, %arg1: i32, %arg2: i32) -> (i32, i32) {
    %c0_i32 = arith.constant 0 : i32
    return %arg0, %arg2 : i32, i32
  }
  func.func @transform_1(%arg0: i32, %arg1: i32, %arg2: i32) -> (i32, i32) {
    %c0_i32 = arith.constant 0 : i32
    return %arg2, %arg1 : i32, i32
  }
  func.func @transform_2(%arg0: i32, %arg1: i32, %arg2: i32) -> (i32, i32) {
    %c0_i32 = arith.constant 0 : i32
    %c0_i32_0 = arith.constant 0 : i32
    return %c0_i32, %arg1 : i32, i32
  }
  func.func @transform_3(%arg0: i32, %arg1: i32, %arg2: i32) -> (i32, i32) {
    %c0_i32 = arith.constant 0 : i32
    return %arg0, %arg1 : i32, i32
  }
}

module attributes {stable_mosaic.version = 11 : i64} {
  func.func @_dense_ln_kernel(%arg0: i32, %arg1: i32, %arg2: memref<16x128xbf16, #tpu.memory_space<vmem>>, %arg3: memref<128x32xbf16, #tpu.memory_space<vmem>>, %arg4: memref<1x32xf32, #tpu.memory_space<vmem>>, %arg5: memref<16x32xbf16, #tpu.memory_space<vmem>>, %arg6: memref<1x32xf32, #tpu.memory_space<vmem>>, %arg7: memref<1x32xf32, #tpu.memory_space<vmem>>, %arg8: memref<16x32xbf16, #tpu.memory_space<vmem>>, %arg9: memref<16x32xf32, #tpu.memory_space<vmem>>) attributes {dimension_semantics = [#tpu.dimension_semantics<parallel>, #tpu.dimension_semantics<arbitrary>], iteration_bounds = array<i64: 1, 1>, scalar_prefetch = 0 : i64, scratch_operands = 1 : i64, tpu.core_type = #tpu.core_type<tc>, window_params = [{transform_indices = @transform_0, window_bounds = array<i64: 16, 128>}, {transform_indices = @transform_1, window_bounds = array<i64: 128, 32>}, {pipeline_mode = #tpu.pipeline_mode<synchronous>, transform_indices = @transform_2, window_bounds = array<i64: 1, 32>}, {transform_indices = @transform_3, window_bounds = array<i64: 16, 32>}, {pipeline_mode = #tpu.pipeline_mode<synchronous>, transform_indices = @transform_4, window_bounds = array<i64: 1, 32>}, {pipeline_mode = #tpu.pipeline_mode<synchronous>, transform_indices = @transform_5, window_bounds = array<i64: 1, 32>}, {transform_indices = @transform_6, window_bounds = array<i64: 16, 32>}]} {
    %c0_i32 = arith.constant 0 : i32
    %0 = arith.cmpi eq, %arg1, %c0_i32 : i32
    %1 = arith.extui %0 : i1 to i32
    %c0_i32_0 = arith.constant 0 : i32
    %2 = arith.cmpi ne, %1, %c0_i32_0 : i32
    scf.if %2 {
      %cst_10 = arith.constant 0.000000e+00 : f32
      %12 = vector.broadcast %cst_10 : f32 to vector<16x32xf32>
      %c0_11 = arith.constant 0 : index
      %c0_12 = arith.constant 0 : index
      %13 = vector.load %arg9[%c0_11, %c0_12] : memref<16x32xf32, #tpu.memory_space<vmem>>, vector<16x32xf32>
      tpu.vector_store %arg9[%c0_11, %c0_12], %12 {strides = array<i32>} : memref<16x32xf32, #tpu.memory_space<vmem>>, vector<16x32xf32>,
    } else {
    }
    %c0 = arith.constant 0 : index
    %c0_1 = arith.constant 0 : index
    %3 = vector.load %arg9[%c0, %c0_1] : memref<16x32xf32, #tpu.memory_space<vmem>>, vector<16x32xf32>
    %c0_2 = arith.constant 0 : index
    %c0_3 = arith.constant 0 : index
    %4 = vector.load %arg2[%c0_2, %c0_3] : memref<16x128xbf16, #tpu.memory_space<vmem>>, vector<16x128xbf16>
    %c0_4 = arith.constant 0 : index
    %c0_5 = arith.constant 0 : index
    %5 = vector.load %arg3[%c0_4, %c0_5] : memref<128x32xbf16, #tpu.memory_space<vmem>>, vector<128x32xbf16>
    %cst = arith.constant dense<0.000000e+00> : vector<16x32xf32>
    %6 = tpu.matmul %4, %5, %cst {dimension_numbers = #tpu.dot_dimension_numbers<[1], [0], [0], [1], [0, 0, 1, 1], [], []>} : vector<16x128xbf16>, vector<128x32xbf16>, vector<16x32xf32> -> vector<16x32xf32>
    %7 = arith.addf %3, %6 : vector<16x32xf32>
    %c0_6 = arith.constant 0 : index
    %c0_7 = arith.constant 0 : index
    %8 = vector.load %arg9[%c0_6, %c0_7] : memref<16x32xf32, #tpu.memory_space<vmem>>, vector<16x32xf32>
    tpu.vector_store %arg9[%c0_6, %c0_7], %7 {strides = array<i32>} : memref<16x32xf32, #tpu.memory_space<vmem>>, vector<16x32xf32>,
    %c0_i32_8 = arith.constant 0 : i32
    %9 = arith.cmpi eq, %arg1, %c0_i32_8 : i32
    %10 = arith.extui %9 : i1 to i32
    %c0_i32_9 = arith.constant 0 : i32
    %11 = arith.cmpi ne, %10, %c0_i32_9 : i32
    scf.if %11 {
      %c0_10 = arith.constant 0 : index
      %c0_11 = arith.constant 0 : index
      %12 = vector.load %arg9[%c0_10, %c0_11] : memref<16x32xf32, #tpu.memory_space<vmem>>, vector<16x32xf32>
      %c0_12 = arith.constant 0 : index
      %c0_13 = arith.constant 0 : index
      %13 = vector.load %arg4[%c0_12, %c0_13] : memref<1x32xf32, #tpu.memory_space<vmem>>, vector<1x32xf32>
      %14 = vector.broadcast %13 : vector<1x32xf32> to vector<16x32xf32>
      %15 = arith.addf %12, %14 : vector<16x32xf32>
      %c0_14 = arith.constant 0 : index
      %c0_15 = arith.constant 0 : index
      %16 = vector.load %arg5[%c0_14, %c0_15] : memref<16x32xbf16, #tpu.memory_space<vmem>>, vector<16x32xbf16>
      %17 = arith.extf %16 : vector<16x32xbf16> to vector<16x32xf32>
      %18 = arith.addf %15, %17 : vector<16x32xf32>
      %cst_16 = arith.constant dense<0.000000e+00> : vector<16xf32>
      %19 = vector.multi_reduction <add>, %18, %cst_16 [1] : vector<16x32xf32> to vector<16xf32>
      %20 = vector.shape_cast %19 : vector<16xf32> to vector<16x1xf32>
      %cst_17 = arith.constant 3.200000e+01 : f32
      %21 = vector.broadcast %cst_17 : f32 to vector<16x1xf32>
      %22 = arith.divf %20, %21 : vector<16x1xf32>
      %23 = vector.broadcast %22 : vector<16x1xf32> to vector<16x32xf32>
      %24 = arith.subf %18, %23 : vector<16x32xf32>
      %25 = arith.mulf %24, %24 : vector<16x32xf32>
      %cst_18 = arith.constant dense<0.000000e+00> : vector<16xf32>
      %26 = vector.multi_reduction <add>, %25, %cst_18 [1] : vector<16x32xf32> to vector<16xf32>
      %27 = vector.shape_cast %26 : vector<16xf32> to vector<16x1xf32>
      %cst_19 = arith.constant 3.200000e+01 : f32
      %28 = vector.broadcast %cst_19 : f32 to vector<16x1xf32>
      %29 = arith.divf %27, %28 : vector<16x1xf32>
      %cst_20 = arith.constant 9.99999996E-13 : f32
      %30 = vector.broadcast %cst_20 : f32 to vector<16x1xf32>
      %31 = arith.addf %29, %30 : vector<16x1xf32>
      %32 = math.rsqrt %31 : vector<16x1xf32>
      %33 = vector.broadcast %32 : vector<16x1xf32> to vector<16x32xf32>
      %34 = arith.mulf %24, %33 : vector<16x32xf32>
      %c0_21 = arith.constant 0 : index
      %c0_22 = arith.constant 0 : index
      %35 = vector.load %arg6[%c0_21, %c0_22] : memref<1x32xf32, #tpu.memory_space<vmem>>, vector<1x32xf32>
      %36 = vector.broadcast %35 : vector<1x32xf32> to vector<16x32xf32>
      %37 = arith.mulf %34, %36 : vector<16x32xf32>
      %c0_23 = arith.constant 0 : index
      %c0_24 = arith.constant 0 : index
      %38 = vector.load %arg7[%c0_23, %c0_24] : memref<1x32xf32, #tpu.memory_space<vmem>>, vector<1x32xf32>
      %39 = vector.broadcast %38 : vector<1x32xf32> to vector<16x32xf32>
      %40 = arith.addf %37, %39 : vector<16x32xf32>
      %41 = arith.truncf %40 : vector<16x32xf32> to vector<16x32xbf16>
      %c0_25 = arith.constant 0 : index
      %c0_26 = arith.constant 0 : index
      %42 = vector.load %arg8[%c0_25, %c0_26] : memref<16x32xbf16, #tpu.memory_space<vmem>>, vector<16x32xbf16>
      tpu.vector_store %arg8[%c0_25, %c0_26], %41 {strides = array<i32>} : memref<16x32xbf16, #tpu.memory_space<vmem>>, vector<16x32xbf16>,
    } else {
    }
    return
  }
  func.func @transform_0(%arg0: i32, %arg1: i32) -> (i32, i32) {
    %c0_i32 = arith.constant 0 : i32
    return %arg0, %arg1 : i32, i32
  }
  func.func @transform_1(%arg0: i32, %arg1: i32) -> (i32, i32) {
    %c0_i32 = arith.constant 0 : i32
    %c0_i32_0 = arith.constant 0 : i32
    return %arg1, %c0_i32 : i32, i32
  }
  func.func @transform_2(%arg0: i32, %arg1: i32) -> (i32, i32) {
    %c0_i32 = arith.constant 0 : i32
    %c0_i32_0 = arith.constant 0 : i32
    %c0_i32_1 = arith.constant 0 : i32
    return %c0_i32, %c0_i32_0 : i32, i32
  }
  func.func @transform_3(%arg0: i32, %arg1: i32) -> (i32, i32) {
    %c0_i32 = arith.constant 0 : i32
    %c0_i32_0 = arith.constant 0 : i32
    return %arg0, %c0_i32 : i32, i32
  }
  func.func @transform_4(%arg0: i32, %arg1: i32) -> (i32, i32) {
    %c0_i32 = arith.constant 0 : i32
    %c0_i32_0 = arith.constant 0 : i32
    %c0_i32_1 = arith.constant 0 : i32
    return %c0_i32, %c0_i32_0 : i32, i32
  }
  func.func @transform_5(%arg0: i32, %arg1: i32) -> (i32, i32) {
    %c0_i32 = arith.constant 0 : i32
    %c0_i32_0 = arith.constant 0 : i32
    %c0_i32_1 = arith.constant 0 : i32
    return %c0_i32, %c0_i32_0 : i32, i32
  }
  func.func @transform_6(%arg0: i32, %arg1: i32) -> (i32, i32) {
    %c0_i32 = arith.constant 0 : i32
    %c0_i32_0 = arith.constant 0 : i32
    return %arg0, %c0_i32 : i32, i32
  }
}

</mosaic_0001>

<llo_original>
// kernel: bert_finetune_cls_forward.12
$region0: #{bert_finetune_cls_forward.12}
  #allocation0 [shape = 'u32[]', space=smem, size = 0x4, offset = 0x4, fixed_abs, tag = 'smem constant byte address 0x4 - core index']
  #allocation1 [shape = 'u32[144,128]{1,0:T(1,128)}', space=vmem, size = 0x12000, scoped, tag = 'internal scratch']
  #allocation2 [shape = 'f32[16,96]{1,0:T(8,128)}', space=vmem, size = 0x2000, scoped, tag = 'scratch operand']
  %s0 = inlined_call_operand.vmem [shape: bf16[16,32], index: 0, kind: input, shape index: {}]
  %s1 = inlined_call_operand.vmem [shape: bf16[32,96], index: 1, kind: input, shape index: {}]
  %s2 = inlined_call_operand.vmem [shape: f32[1,96], index: 2, kind: input, shape index: {}]
  %s3 = inlined_call_operand.vmem [shape: bf16[16,96], index: 3, kind: output, shape index: {}]
  %s4 = sld [smem:[#allocation0]]
  $region30: #{bert_finetune_cls_forward.12} parent=0
    _
  %s6 = ssub.s32 1, %s4
  %s7 = scalar_select 0, %s6, %s4
  // Predicated region
  $region2: #{bert_finetune_cls_forward.12} parent=0 // pred_check
    _
  $region3: #{bert_finetune_cls_forward.12} parent=0 // pred_check_branch
    %9 = sbr.rel (0) target = $region5
  $region4: #{bert_finetune_cls_forward.12} parent=0 // pred_region
    _
  $region5: #{bert_finetune_cls_forward.12} parent=0 // pred_fallthru
    _
  // Predicated region
  $region6: #{bert_finetune_cls_forward.12} parent=0 // pred_check
    _
  $region7: #{bert_finetune_cls_forward.12} parent=0 // pred_check_branch
    %11 = sbr.rel (0) target = $region9
  $region8: #{bert_finetune_cls_forward.12} parent=0 // pred_region
    _
  $region9: #{bert_finetune_cls_forward.12} parent=0 // pred_fallthru
    _
  // Predicated region
  $region10: #{bert_finetune_cls_forward.12} parent=0 // pred_check
    _
  $region11: #{bert_finetune_cls_forward.12} parent=0 // pred_check_branch
    %13 = sbr.rel (0) target = $region13
  $region12: #{bert_finetune_cls_forward.12} parent=0 // pred_region
    _
  $region13: #{bert_finetune_cls_forward.12} parent=0 // pred_fallthru
    _
  %p15 = scmp.eq.s32.totalorder 0, 0
  // Predicated region
  $region14: #{bert_finetune_cls_forward.12} parent=0 // pred_check
    %p16 = pneg %p15
  $region15: #{bert_finetune_cls_forward.12} parent=0 // pred_check_branch
    %18 = sbr.rel (%p16) target = $region17
  $region16: #{bert_finetune_cls_forward.12} parent=0 // pred_region
    %vm19 = vcmask 785408
    %20 = vst.msk [vmem:[#allocation2] sm:$0xff] %vm19, 0.0
    %21 = vst.msk [vmem:[#allocation2 + $0x8] sm:$0xff] %vm19, 0.0
  $region17: #{bert_finetune_cls_forward.12} parent=0 // pred_fallthru
    _
  %v22 = vld [vmem:[#allocation2] sm:$0xff]
  %v23 = vld [vmem:[#allocation2 + $0x8] sm:$0xff]
  %v24 = vld [vmem:[%s0] sm:$0xf]
  %v25 = vld [vmem:[%s0 + $0x4] sm:$0xf]
  %v26 = vld [vmem:[%s1] sm:$0xf]
  %v27 = vld [vmem:[%s1 + $0x4] sm:$0xf]
  %v28 = vld [vmem:[%s1 + $0x8] sm:$0xf]
  %v29 = vld [vmem:[%s1 + $0xc] sm:$0xf]
  %v32 = vunpack.c.l.b16 %v24
  %v33 = vunpack.c.l.b16 %v25
  %v34 = vpack.c.b16 %v33, %v32
  %v39 = vunpack.c.l.b16 %v26
  %v40 = vunpack.c.l.b16 %v27
  %v41 = vunpack.c.l.b16 %v28
  %v42 = vunpack.c.l.b16 %v29
  %v43 = vpack.c.b16 %v40, %v39
  %v44 = vpack.c.b16 %v42, %v41
  %vm47 = vcmask 261120
  %v49 = vsel %vm47, %v34, 0
  %51 = vmatprep.subr.bf16.mxu0 0
  %52 = vmatpush1.bf16.msra.mxu0 %v43
  %53 = vmatprep.subr.bf16.mxu0 0
  %54 = vmatpush1.bf16.msra.mxu0 %v44
  %55 = vmatprep.subr.bf16.mxu0 0
  %56 = vmatpush1.bf16.msra.mxu0 0
  %57 = vmatprep.subr.bf16.mxu0 0
  %58 = vmatpush1.bf16.msra.mxu0 0
  %59 = vmatprep.subr.bf16.mxu0 0
  %60 = vmatpush1.bf16.msra.mxu0 0
  %61 = vmatprep.subr.bf16.mxu0 0
  %62 = vmatpush1.bf16.msra.mxu0 0
  %63 = vmatprep.subr.bf16.mxu0 0
  %64 = vmatpush1.bf16.msra.mxu0 0
  %65 = vmatprep.subr.bf16.mxu0 0
  %66 = vmatpush1.bf16.msra.mxu0 0
  %67 = vmatprep.subr.bf16.mxu0 0
  %68 = vmatpush1.bf16.msra.mxu0 0
  %69 = vmatprep.subr.bf16.mxu0 0
  %70 = vmatpush1.bf16.msra.mxu0 0
  %71 = vmatprep.subr.bf16.mxu0 0
  %72 = vmatpush1.bf16.msra.mxu0 0
  %73 = vmatprep.subr.bf16.mxu0 0
  %74 = vmatpush1.bf16.msra.mxu0 0
  %75 = vmatprep.subr.bf16.mxu0 0
  %76 = vmatpush1.bf16.msra.mxu0 0
  %77 = vmatprep.subr.bf16.mxu0 0
  %78 = vmatpush1.bf16.msra.mxu0 0
  %79 = vmatprep.subr.bf16.mxu0 0
  %80 = vmatpush1.bf16.msra.mxu0 0
  %81 = vmatprep.subr.bf16.mxu0 0
  %82 = vmatpush1.bf16.msra.mxu0 0
  %83 = vmatprep.mubr.bf16.mxu0 0
  %84 = vmatmul.mubr.bf16.gmra.mrb[0].mxu0 %v49
  %v85 = vpop.f32.mrb[0].mxu0
  %v86 = vadd.f32 0.0, %v85
  %v87 = vpop.f32.mrb[0].mxu0
  %v88 = vpop.f32.mrb[0].mxu0
  %v89 = vadd.f32 0.0, %v88
  %v90 = vpop.f32.mrb[0].mxu0
  %91 = vdwg.mxu0
  %v92 = vadd.f32 %v22, %v86
  %v93 = vadd.f32 %v23, %v89
  %vm94 = vcmask 785408
  %95 = vst.msk [vmem:[#allocation2] sm:$0xff] %vm94, %v92
  %96 = vst.msk [vmem:[#allocation2 + $0x8] sm:$0xff] %vm94, %v93
  // Predicated region
  $region18: #{bert_finetune_cls_forward.12} parent=0 // pred_check
    %p97 = pneg %p15
  $region19: #{bert_finetune_cls_forward.12} parent=0 // pred_check_branch
    %99 = sbr.rel (%p97) target = $region21
  $region20: #{bert_finetune_cls_forward.12} parent=0 // pred_region
    %v100 = vld [vmem:[#allocation2] sm:$0xff]
    %v101 = vld [vmem:[#allocation2 + $0x8] sm:$0xff]
    %v102 = vld [vmem:[%s2] sm:$0x1]
    %v104 = vlaneseq
    %v105 = vshrl.u32 %v104, 7
    %v106 = vsub.s32 0, %v105
    %v107 = vrot.slane %v102, %v106
    %v109 = vadd.f32 %v100, %v107
    %v110 = vadd.f32 %v101, %v107
    %v111 = vpack.c.bf16 %v110, %v109
    %v113 = vunpack.c.l.b16 %v111
    %v114 = vunpack.c.h.b16 %v111
    %v115 = vpack.c.b16 %v113, %v113
    %v116 = vpack.c.b16 %v114, %v114
    %vm119 = vcmask 781312
    %120 = vst.msk [vmem:[%s3] sm:$0xf] %vm119, %v115
    %121 = vst.msk [vmem:[%s3 + $0x4] sm:$0xf] %vm119, %v116
  $region21: #{bert_finetune_cls_forward.12} parent=0 // pred_fallthru
    _
  // Predicated region
  $region22: #{bert_finetune_cls_forward.12} parent=0 // pred_check
    _
  $region23: #{bert_finetune_cls_forward.12} parent=0 // pred_check_branch
    %123 = sbr.rel (0) target = $region25
  $region24: #{bert_finetune_cls_forward.12} parent=0 // pred_region
    _
  $region25: #{bert_finetune_cls_forward.12} parent=0 // pred_fallthru
    _
  // Predicated region
  $region26: #{bert_finetune_cls_forward.12} parent=0 // pred_check
    _
  $region27: #{bert_finetune_cls_forward.12} parent=0 // pred_check_branch
    %125 = sbr.rel (0) target = $region29
  $region28: #{bert_finetune_cls_forward.12} parent=0 // pred_region
    _
  $region29: #{bert_finetune_cls_forward.12} parent=0 // pred_fallthru
    _

// kernel: bert_finetune_cls_forward.11
$region0: #{bert_finetune_cls_forward.11}
  #allocation0 [shape = 'u32[]', space=smem, size = 0x4, offset = 0x4, fixed_abs, tag = 'smem constant byte address 0x4 - core index']
  #allocation1 [shape = 'u32[144,128]{1,0:T(1,128)}', space=vmem, size = 0x12000, scoped, tag = 'internal scratch']
  %s0 = inlined_call_operand.vmem [shape: f32[16,32], index: 0, kind: input, shape index: {}]
  %s1 = inlined_call_operand.vmem [shape: f32[1,32], index: 1, kind: input, shape index: {}]
  %s2 = inlined_call_operand.vmem [shape: f32[1,32], index: 2, kind: input, shape index: {}]
  %s3 = inlined_call_operand.vmem [shape: bf16[16,32], index: 3, kind: output, shape index: {}]
  %s4 = sld [smem:[#allocation0]]
  $region22: #{bert_finetune_cls_forward.11} parent=0
    _
  %s6 = ssub.s32 1, %s4
  %s7 = scalar_select 0, %s6, %s4
  // Predicated region
  $region2: #{bert_finetune_cls_forward.11} parent=0 // pred_check
    _
  $region3: #{bert_finetune_cls_forward.11} parent=0 // pred_check_branch
    %9 = sbr.rel (0) target = $region5
  $region4: #{bert_finetune_cls_forward.11} parent=0 // pred_region
    _
  $region5: #{bert_finetune_cls_forward.11} parent=0 // pred_fallthru
    _
  // Predicated region
  $region6: #{bert_finetune_cls_forward.11} parent=0 // pred_check
    _
  $region7: #{bert_finetune_cls_forward.11} parent=0 // pred_check_branch
    %11 = sbr.rel (0) target = $region9
  $region8: #{bert_finetune_cls_forward.11} parent=0 // pred_region
    _
  $region9: #{bert_finetune_cls_forward.11} parent=0 // pred_fallthru
    _
  // Predicated region
  $region10: #{bert_finetune_cls_forward.11} parent=0 // pred_check
    _
  $region11: #{bert_finetune_cls_forward.11} parent=0 // pred_check_branch
    %13 = sbr.rel (0) target = $region13
  $region12: #{bert_finetune_cls_forward.11} parent=0 // pred_region
    _
  $region13: #{bert_finetune_cls_forward.11} parent=0 // pred_fallthru
    _
  %v14 = vld [vmem:[%s0] sm:$0xff]
  %v15 = vld [vmem:[%s0 + $0x8] sm:$0xff]
  %vm16 = vcmask 261120
  %v17 = vsel %vm16, %v14, 0.0
  %18 = vadd.xlane.f32.xlu0 %v17
  %v19 = vpop.xlane.xlu0 %18
  %v20 = vsel %vm16, %v15, 0.0
  %21 = vadd.xlane.f32.xlu0 %v20
  %v22 = vpop.xlane.xlu0 %21
  %v23 = vrcp.pop 32.0
  %v24 = vmul.f32 %v19, %v23
  %v25 = vmul.f32 %v22, %v23
  %v26 = vsub.f32 %v14, %v24
  %v27 = vsub.f32 %v15, %v25
  %v28 = vmul.f32 %v26, %v26
  %v29 = vmul.f32 %v27, %v27
  %v30 = vsel %vm16, %v28, 0.0
  %31 = vadd.xlane.f32.xlu0 %v30
  %v32 = vpop.xlane.xlu0 %31
  %v33 = vsel %vm16, %v29, 0.0
  %34 = vadd.xlane.f32.xlu0 %v33
  %v35 = vpop.xlane.xlu0 %34
  %v36 = vmul.f32 %v32, %v23
  %v37 = vmul.f32 %v35, %v23
  %v38 = vadd.f32 %v36, 1e-12
  %v39 = vadd.f32 %v37, 1e-12
  %v40 = vrsqrt.pop %v38
  %v41 = vrsqrt.pop %v39
  %v42 = vmul.f32 %v26, %v40
  %v43 = vmul.f32 %v27, %v41
  %v44 = vld [vmem:[%s1] sm:$0x1]
  %v46 = vlaneseq
  %v47 = vshrl.u32 %v46, 7
  %v48 = vsub.s32 0, %v47
  %v49 = vrot.slane %v44, %v48
  %v51 = vmul.f32 %v42, %v49
  %v52 = vmul.f32 %v43, %v49
  %v53 = vld [vmem:[%s2] sm:$0x1]
  %v55 = vlaneseq
  %v56 = vshrl.u32 %v55, 7
  %v57 = vsub.s32 0, %v56
  %v58 = vrot.slane %v53, %v57
  %v60 = vadd.f32 %v51, %v58
  %v61 = vadd.f32 %v52, %v58
  %v62 = vpack.c.bf16 %v61, %v60
  %v64 = vunpack.c.l.b16 %v62
  %v65 = vunpack.c.h.b16 %v62
  %v66 = vpack.c.b16 %v64, %v64
  %v67 = vpack.c.b16 %v65, %v65
  %vm70 = vcmask 257024
  %71 = vst.msk [vmem:[%s3] sm:$0xf] %vm70, %v66
  %72 = vst.msk [vmem:[%s3 + $0x4] sm:$0xf] %vm70, %v67
  // Predicated region
  $region14: #{bert_finetune_cls_forward.11} parent=0 // pred_check
    _
  $region15: #{bert_finetune_cls_forward.11} parent=0 // pred_check_branch
    %74 = sbr.rel (0) target = $region17
  $region16: #{bert_finetune_cls_forward.11} parent=0 // pred_region
    _
  $region17: #{bert_finetune_cls_forward.11} parent=0 // pred_fallthru
    _
  // Predicated region
  $region18: #{bert_finetune_cls_forward.11} parent=0 // pred_check
    _
  $region19: #{bert_finetune_cls_forward.11} parent=0 // pred_check_branch
    %76 = sbr.rel (0) target = $region21
  $region20: #{bert_finetune_cls_forward.11} parent=0 // pred_region
    _
  $region21: #{bert_finetune_cls_forward.11} parent=0 // pred_fallthru
    _

// kernel: bert_finetune_cls_forward.13
$region0: #{bert_finetune_cls_forward.13}
  #allocation0 [shape = 'u32[]', space=smem, size = 0x4, offset = 0x4, fixed_abs, tag = 'smem constant byte address 0x4 - core index']
  #allocation1 [shape = 'u32[144,128]{1,0:T(1,128)}', space=vmem, size = 0x12000, scoped, tag = 'internal scratch']
  %s0 = inlined_call_operand.vmem [shape: bf16[2,4,8,8], index: 0, kind: input, shape index: {}]
  %s1 = inlined_call_operand.vmem [shape: bf16[2,4,8,8], index: 1, kind: input, shape index: {}]
  %s2 = inlined_call_operand.vmem [shape: bf16[2,4,8,8], index: 2, kind: input, shape index: {}]
  %s3 = inlined_call_operand.vmem [shape: f32[2,1,8], index: 3, kind: input, shape index: {}]
  %s4 = inlined_call_operand.vmem [shape: bf16[2,4,8,8], index: 4, kind: output, shape index: {}]
  %s5 = sld [smem:[#allocation0]]
  $region49: #{bert_finetune_cls_forward.13} parent=0
    _
  %s7 = ssub.s32 1, %s5
  %s8 = scalar_select 0, %s7, %s5
  loop: start=0, step=1, limit=10
  $region2: #{bert_finetune_cls_forward.13} parent=0 // loop_pre_header
    _
  $region3: #{bert_finetune_cls_forward.13} parent=0 // loop_header
    %s10 = sphi 0, %s14
    %p11 = scmp.ge.s32.totalorder %s10, 10
    %s17 = sphi 0, %s29
    %s18 = sphi 0, %s25
    %s19 = sphi 0, %s17
    %s20 = sphi 0, %s18
    %s21 = sphi 0, %s19
    %s22 = sphi 0, %s20
    %s34 = sphi 0, %s36
    %s37 = sphi 0, %s34
    %s38 = sphi 0, %s37
    %s54 = sphi 0, %s38
    %s62 = sphi 0, %s64
    %s65 = sphi 0, %s62
    %s66 = sphi 0, %s65
    %s82 = sphi 0, %s66
    %s90 = sphi 0, %s92
    %s93 = sphi 0, %s90
    %s94 = sphi 0, %s93
    %s110 = sphi 0, %s94
    %s116 = sphi 0, %s118
    %s119 = sphi 0, %s116
    %s120 = sphi 0, %s119
    %s136 = sphi 0, %s120
    %s144 = sphi 0, %s146
    %s147 = sphi 0, %s144
    %s148 = sphi 0, %s147
    %s164 = sphi 0, %s148
  $region4: #{bert_finetune_cls_forward.13} parent=0 // loop_header_branch
    %13 = sbr.rel (%p11) target = $region8
  $region5: #{bert_finetune_cls_forward.13} parent=0 // loop_body
    %s15 = ssub.s32 %s10, 1
    %s16 = ssub.s32 %s10, 2
    %s23 = sadd.s32 1, %s18
    %p24 = scmp.ge.s32.totalorder %s23, 4
    %s25 = scalar_select %p24, 0, %s23
    %s26 = sadd.s32 1, %s17
    %s27 = scalar_select %p24, %s26, %s17
    %p28 = scmp.ge.s32.totalorder %s27, 2
    %s29 = scalar_select %p28, 0, %s27
    %s30 = ssub.s32 %s17, %s29
    %s31 = ssub.s32 %s18, %s25
    %s32 = sor.u32 %s30, %s31
    %p33 = scmp.eq.s32.totalorder %s32, 0
    %s35 = sadd.s32 %s34, 1
    %s36 = scalar_select %p33, %s34, %s35
    %p39 = pneg %p33
    %p40 = scmp.eq.s32.totalorder %s10, 7
    %p41 = por %p39, %p40
    %p42 = scmp.ne.s32.totalorder %s34, %s37
    %p43 = scmp.eq.s32.totalorder %s10, 0
    %p44 = por %p42, %p43
    %p45 = scmp.ne.s32.totalorder %s34, %s37
    %p46 = scmp.eq.s32.totalorder %s15, 7
    %p47 = por %p45, %p46
    %p48 = scmp.ne.s32.totalorder %s37, %s38
    %p49 = scmp.eq.s32.totalorder %s15, 0
    %p50 = por %p48, %p49
    %p51 = scmp.ne.s32.totalorder %s37, %s38
    %p52 = scmp.eq.s32.totalorder %s16, 7
    %p53 = por %p51, %p52
    %p55 = scmp.ne.s32.totalorder %s38, %s54
    %p56 = scmp.eq.s32.totalorder %s16, 0
    %p57 = por %p55, %p56
    %s58 = ssub.s32 %s17, %s29
    %s59 = ssub.s32 %s18, %s25
    %s60 = sor.u32 %s58, %s59
    %p61 = scmp.eq.s32.totalorder %s60, 0
    %s63 = sadd.s32 %s62, 1
    %s64 = scalar_select %p61, %s62, %s63
    %p67 = pneg %p61
    %p68 = scmp.eq.s32.totalorder %s10, 7
    %p69 = por %p67, %p68
    %p70 = scmp.ne.s32.totalorder %s62, %s65
    %p71 = scmp.eq.s32.totalorder %s10, 0
    %p72 = por %p70, %p71
    %p73 = scmp.ne.s32.totalorder %s62, %s65
    %p74 = scmp.eq.s32.totalorder %s15, 7
    %p75 = por %p73, %p74
    %p76 = scmp.ne.s32.totalorder %s65, %s66
    %p77 = scmp.eq.s32.totalorder %s15, 0
    %p78 = por %p76, %p77
    %p79 = scmp.ne.s32.totalorder %s65, %s66
    %p80 = scmp.eq.s32.totalorder %s16, 7
    %p81 = por %p79, %p80
    %p83 = scmp.ne.s32.totalorder %s66, %s82
    %p84 = scmp.eq.s32.totalorder %s16, 0
    %p85 = por %p83, %p84
    %s86 = ssub.s32 %s17, %s29
    %s87 = ssub.s32 %s18, %s25
    %s88 = sor.u32 %s86, %s87
    %p89 = scmp.eq.s32.totalorder %s88, 0
    %s91 = sadd.s32 %s90, 1
    %s92 = scalar_select %p89, %s90, %s91
    %p95 = pneg %p89
    %p96 = scmp.eq.s32.totalorder %s10, 7
    %p97 = por %p95, %p96
    %p98 = scmp.ne.s32.totalorder %s90, %s93
    %p99 = scmp.eq.s32.totalorder %s10, 0
    %p100 = por %p98, %p99
    %p101 = scmp.ne.s32.totalorder %s90, %s93
    %p102 = scmp.eq.s32.totalorder %s15, 7
    %p103 = por %p101, %p102
    %p104 = scmp.ne.s32.totalorder %s93, %s94
    %p105 = scmp.eq.s32.totalorder %s15, 0
    %p106 = por %p104, %p105
    %p107 = scmp.ne.s32.totalorder %s93, %s94
    %p108 = scmp.eq.s32.totalorder %s16, 7
    %p109 = por %p107, %p108
    %p111 = scmp.ne.s32.totalorder %s94, %s110
    %p112 = scmp.eq.s32.totalorder %s16, 0
    %p113 = por %p111, %p112
    %s114 = ssub.s32 %s17, %s29
    %p115 = scmp.eq.s32.totalorder %s114, 0
    %s117 = sadd.s32 %s116, 1
    %s118 = scalar_select %p115, %s116, %s117
    %p121 = pneg %p115
    %p122 = scmp.eq.s32.totalorder %s10, 7
    %p123 = por %p121, %p122
    %p124 = scmp.ne.s32.totalorder %s116, %s119
    %p125 = scmp.eq.s32.totalorder %s10, 0
    %p126 = por %p124, %p125
    %p127 = scmp.ne.s32.totalorder %s116, %s119
    %p128 = scmp.eq.s32.totalorder %s15, 7
    %p129 = por %p127, %p128
    %p130 = scmp.ne.s32.totalorder %s119, %s120
    %p131 = scmp.eq.s32.totalorder %s15, 0
    %p132 = por %p130, %p131
    %p133 = scmp.ne.s32.totalorder %s119, %s120
    %p134 = scmp.eq.s32.totalorder %s16, 7
    %p135 = por %p133, %p134
    %p137 = scmp.ne.s32.totalorder %s120, %s136
    %p138 = scmp.eq.s32.totalorder %s16, 0
    %p139 = por %p137, %p138
    %s140 = ssub.s32 %s17, %s29
    %s141 = ssub.s32 %s18, %s25
    %s142 = sor.u32 %s140, %s141
    %p143 = scmp.eq.s32.totalorder %s142, 0
    %s145 = sadd.s32 %s144, 1
    %s146 = scalar_select %p143, %s144, %s145
    %p149 = pneg %p143
    %p150 = scmp.eq.s32.totalorder %s10, 7
    %p151 = por %p149, %p150
    %p152 = scmp.ne.s32.totalorder %s144, %s147
    %p153 = scmp.eq.s32.totalorder %s10, 0
    %p154 = por %p152, %p153
    %p155 = scmp.ne.s32.totalorder %s144, %s147
    %p156 = scmp.eq.s32.totalorder %s15, 7
    %p157 = por %p155, %p156
    %p158 = scmp.ne.s32.totalorder %s147, %s148
    %p159 = scmp.eq.s32.totalorder %s15, 0
    %p160 = por %p158, %p159
    %p161 = scmp.ne.s32.totalorder %s147, %s148
    %p162 = scmp.eq.s32.totalorder %s16, 7
    %p163 = por %p161, %p162
    %p165 = scmp.ne.s32.totalorder %s148, %s164
    %p166 = scmp.eq.s32.totalorder %s16, 0
    %p167 = por %p165, %p166
    %p168 = scmp.le.s32.totalorder 1, %s10
    %p169 = scmp.lt.s32.totalorder %s10, 9
    %p170 = pnand %p168, %p169
    %p171 = pneg %p170
    // Predicated region
    $region9: #{bert_finetune_cls_forward.13} parent=5 // pred_check
      _
    $region10: #{bert_finetune_cls_forward.13} parent=5 // pred_check_branch
      %173 = sbr.rel (%p170) target = $region12
    $region11: #{bert_finetune_cls_forward.13} parent=5 // pred_region
      %s174 = ssub.s32 %s10, 1
    $region12: #{bert_finetune_cls_forward.13} parent=5 // pred_fallthru
      _
    %p175 = scmp.lt.s32.totalorder %s10, 8
    // Predicated region
    $region13: #{bert_finetune_cls_forward.13} parent=5 // pred_check
      %p176 = pneg %p175
    $region14: #{bert_finetune_cls_forward.13} parent=5 // pred_check_branch
      %178 = sbr.rel (%p176) target = $region16
    $region15: #{bert_finetune_cls_forward.13} parent=5 // pred_region
      // Predicated region
      $region17: #{bert_finetune_cls_forward.13} parent=15 // pred_check
        %p179 = pneg %p44
      $region18: #{bert_finetune_cls_forward.13} parent=15 // pred_check_branch
        %181 = sbr.rel (%p179) target = $region20
      $region19: #{bert_finetune_cls_forward.13} parent=15 // pred_region
        %p182 = scmp.lt.s32.totalorder %s17, 1
        %s183 = scalar_select %p182, %s17, 1
        %p184 = scmp.lt.s32.totalorder %s18, 3
        %s185 = scalar_select %p184, %s18, 3
        %s186 = smul.addr %s183, 4
        %s187 = sadd.s32 %s185, %s186
        %s188 = smul.addr %s187, 4
        %s189 = scalar_lea.vmem %s0, %s188
      $region20: #{bert_finetune_cls_forward.13} parent=15 // pred_fallthru
        _
      // Predicated region
      $region21: #{bert_finetune_cls_forward.13} parent=15 // pred_check
        %p190 = pneg %p72
      $region22: #{bert_finetune_cls_forward.13} parent=15 // pred_check_branch
        %192 = sbr.rel (%p190) target = $region24
      $region23: #{bert_finetune_cls_forward.13} parent=15 // pred_region
        %p193 = scmp.lt.s32.totalorder %s17, 1
        %s194 = scalar_select %p193, %s17, 1
        %p195 = scmp.lt.s32.totalorder %s18, 3
        %s196 = scalar_select %p195, %s18, 3
        %s197 = smul.addr %s194, 4
        %s198 = sadd.s32 %s196, %s197
        %s199 = smul.addr %s198, 4
        %s200 = scalar_lea.vmem %s1, %s199
      $region24: #{bert_finetune_cls_forward.13} parent=15 // pred_fallthru
        _
      // Predicated region
      $region25: #{bert_finetune_cls_forward.13} parent=15 // pred_check
        %p201 = pneg %p100
      $region26: #{bert_finetune_cls_forward.13} parent=15 // pred_check_branch
        %203 = sbr.rel (%p201) target = $region28
      $region27: #{bert_finetune_cls_forward.13} parent=15 // pred_region
        %p204 = scmp.lt.s32.totalorder %s17, 1
        %s205 = scalar_select %p204, %s17, 1
        %p206 = scmp.lt.s32.totalorder %s18, 3
        %s207 = scalar_select %p206, %s18, 3
        %s208 = smul.addr %s205, 4
        %s209 = sadd.s32 %s207, %s208
        %s210 = smul.addr %s209, 4
        %s211 = scalar_lea.vmem %s2, %s210
      $region28: #{bert_finetune_cls_forward.13} parent=15 // pred_fallthru
        _
      // Predicated region
      $region29: #{bert_finetune_cls_forward.13} parent=15 // pred_check
        %p212 = pneg %p126
      $region30: #{bert_finetune_cls_forward.13} parent=15 // pred_check_branch
        %214 = sbr.rel (%p212) target = $region32
      $region31: #{bert_finetune_cls_forward.13} parent=15 // pred_region
        %p215 = scmp.lt.s32.totalorder %s17, 1
        %s216 = scalar_select %p215, %s17, 1
        %s217 = scalar_lea.vmem %s3, %s216
      $region32: #{bert_finetune_cls_forward.13} parent=15 // pred_fallthru
        _
    $region16: #{bert_finetune_cls_forward.13} parent=5 // pred_fallthru
      _
    %p218 = scmp.le.s32.totalorder 1, %s10
    %p219 = scmp.lt.s32.totalorder %s10, 9
    %p220 = pnand %p218, %p219
    %p221 = pneg %p220
    // Predicated region
    $region33: #{bert_finetune_cls_forward.13} parent=5 // pred_check
      _
    $region34: #{bert_finetune_cls_forward.13} parent=5 // pred_check_branch
      %223 = sbr.rel (%p220) target = $region36
    $region35: #{bert_finetune_cls_forward.13} parent=5 // pred_region
      %s224 = ssub.s32 %s10, 1
      %p225 = scmp.lt.s32.totalorder %s19, 1
      %s226 = scalar_select %p225, %s19, 1
      %p227 = scmp.lt.s32.totalorder %s20, 3
      %s228 = scalar_select %p227, %s20, 3
      %s229 = smul.addr %s226, 4
      %s230 = sadd.s32 %s228, %s229
      %s231 = smul.addr %s230, 4
      %s232 = scalar_lea.vmem %s0, %s231
      %p233 = pneg %p50
      %p234 = pneg %p47
      %p235 = scmp.lt.s32.totalorder %s19, 1
      %s236 = scalar_select %p235, %s19, 1
      %p237 = scmp.lt.s32.totalorder %s20, 3
      %s238 = scalar_select %p237, %s20, 3
      %s239 = smul.addr %s236, 4
      %s240 = sadd.s32 %s238, %s239
      %s241 = smul.addr %s240, 4
      %s242 = scalar_lea.vmem %s1, %s241
      %p243 = pneg %p78
      %p244 = pneg %p75
      %p245 = scmp.lt.s32.totalorder %s19, 1
      %s246 = scalar_select %p245, %s19, 1
      %p247 = scmp.lt.s32.totalorder %s20, 3
      %s248 = scalar_select %p247, %s20, 3
      %s249 = smul.addr %s246, 4
      %s250 = sadd.s32 %s248, %s249
      %s251 = smul.addr %s250, 4
      %s252 = scalar_lea.vmem %s2, %s251
      %p253 = pneg %p106
      %p254 = pneg %p103
      %p255 = scmp.lt.s32.totalorder %s19, 1
      %s256 = scalar_select %p255, %s19, 1
      %s257 = scalar_lea.vmem %s3, %s256
      %p258 = pneg %p132
      %p259 = pneg %p129
      %p260 = pneg %p160
      %p261 = pneg %p157
      %p262 = scmp.lt.s32.totalorder %s19, 1
      %s263 = scalar_select %p262, %s19, 1
      %p264 = scmp.lt.s32.totalorder %s20, 3
      %s265 = scalar_select %p264, %s20, 3
      %s266 = smul.addr %s263, 4
      %s267 = sadd.s32 %s265, %s266
      %s268 = smul.addr %s267, 4
      %s269 = scalar_lea.vmem %s4, %s268
      %p270 = scmp.lt.s32.totalorder %s19, 1
      %s271 = scalar_select %p270, %s19, 1
      %p272 = scmp.lt.s32.totalorder %s20, 3
      %s273 = scalar_select %p272, %s20, 3
      %s274 = smul.addr %s271, 4
      %s275 = sadd.s32 %s273, %s274
      %s276 = smul.addr %s275, 4
      %s277 = scalar_lea.vmem %s0, %s276
      %p278 = scmp.lt.s32.totalorder %s19, 1
      %s279 = scalar_select %p278, %s19, 1
      %p280 = scmp.lt.s32.totalorder %s20, 3
      %s281 = scalar_select %p280, %s20, 3
      %s282 = smul.addr %s279, 4
      %s283 = sadd.s32 %s281, %s282
      %s284 = smul.addr %s283, 4
      %s285 = scalar_lea.vmem %s1, %s284
      %p286 = scmp.lt.s32.totalorder %s19, 1
      %s287 = scalar_select %p286, %s19, 1
      %p288 = scmp.lt.s32.totalorder %s20, 3
      %s289 = scalar_select %p288, %s20, 3
      %s290 = smul.addr %s287, 4
      %s291 = sadd.s32 %s289, %s290
      %s292 = smul.addr %s291, 4
      %s293 = scalar_lea.vmem %s2, %s292
      %p294 = scmp.lt.s32.totalorder %s19, 1
      %s295 = scalar_select %p294, %s19, 1
      %s296 = scalar_lea.vmem %s3, %s295
      %p297 = scmp.lt.s32.totalorder %s19, 1
      %s298 = scalar_select %p297, %s19, 1
      %p299 = scmp.lt.s32.totalorder %s20, 3
      %s300 = scalar_select %p299, %s20, 3
      %s301 = smul.addr %s298, 4
      %s302 = sadd.s32 %s300, %s301
      %s303 = smul.addr %s302, 4
      %s304 = scalar_lea.vmem %s4, %s303
      %v307 = vld [vmem:[%s277] sm:$0xf]
      %v308 = vmul.bf16 %v307, 1052065461
      %v309 = vld [vmem:[%s285] sm:$0xf]
      %v310 = vld [vmem:[%s293] sm:$0xf]
      %v311 = vld [vmem:[%s296] sm:$0x1]
      %v313 = vlaneseq
      %v314 = vshrl.u32 %v313, 7
      %v315 = vsub.s32 0, %v314
      %v316 = vrot.slane %v311, %v315
      %vm318 = vcmask 64512
      %v320 = vsel %vm318, %v308, 0
      %v323 = vsel %vm318, %v309, 0
      %325 = vmatprep.subr.bf16.mxu0 0
      %326 = vmatpush1.bf16.xpose.msra.mxu0 %v323
      %327 = vmatprep.subr.bf16.mxu0 0
      %328 = vmatpush1.bf16.xpose.msra.mxu0 0
      %329 = vmatprep.subr.bf16.mxu0 0
      %330 = vmatpush1.bf16.xpose.msra.mxu0 0
      %331 = vmatprep.subr.bf16.mxu0 0
      %332 = vmatpush1.bf16.xpose.msra.mxu0 0
      %333 = vmatprep.subr.bf16.mxu0 0
      %334 = vmatpush1.bf16.xpose.msra.mxu0 0
      %335 = vmatprep.subr.bf16.mxu0 0
      %336 = vmatpush1.bf16.xpose.msra.mxu0 0
      %337 = vmatprep.subr.bf16.mxu0 0
      %338 = vmatpush1.bf16.xpose.msra.mxu0 0
      %339 = vmatprep.subr.bf16.mxu0 0
      %340 = vmatpush1.bf16.xpose.msra.mxu0 0
      %341 = vmatprep.subr.bf16.mxu0 0
      %342 = vmatpush1.bf16.xpose.msra.mxu0 0
      %343 = vmatprep.subr.bf16.mxu0 0
      %344 = vmatpush1.bf16.xpose.msra.mxu0 0
      %345 = vmatprep.subr.bf16.mxu0 0
      %346 = vmatpush1.bf16.xpose.msra.mxu0 0
      %347 = vmatprep.subr.bf16.mxu0 0
      %348 = vmatpush1.bf16.xpose.msra.mxu0 0
      %349 = vmatprep.subr.bf16.mxu0 0
      %350 = vmatpush1.bf16.xpose.msra.mxu0 0
      %351 = vmatprep.subr.bf16.mxu0 0
      %352 = vmatpush1.bf16.xpose.msra.mxu0 0
      %353 = vmatprep.subr.bf16.mxu0 0
      %354 = vmatpush1.bf16.xpose.msra.mxu0 0
      %355 = vmatprep.subr.bf16.mxu0 0
      %356 = vmatpush1.bf16.xpose.msra.mxu0 0
      %357 = vmatprep.mubr.bf16.mxu0 0
      %358 = vmatmul.mubr.bf16.gmra.mrb[0].mxu0 %v320
      %v359 = vpop.f32.mrb[0].mxu0
      %v360 = vadd.f32 %v316, %v359
      %v361 = vpop.f32.mrb[0].mxu0
      %v362 = vpop.f32.mrb[0].mxu0
      %v363 = vpop.f32.mrb[0].mxu0
      %364 = vdwg.mxu0
      %v365 = vsel %vm318, %v360, -inf
      %366 = vmax.xlane.f32.xlu0 %v365
      %v367 = vpop.xlane.xlu0 %366
      %v368 = vsub.f32 %v360, %v367
      %v369 = vmul.f32 %v368, 1.442695
      %v370 = vpow.pop %v369
      %v371 = vsel %vm318, %v370, 0.0
      %372 = vadd.xlane.f32.xlu0 %v371
      %v373 = vpop.xlane.xlu0 %372
      %v374 = vrcp.pop %v373
      %v375 = vmul.f32 %v370, %v374
      %v376 = vpack.c.bf16 %v375, %v375
      %v378 = vsel %vm318, %v376, 0
      %vm380 = vcmask 1043456
      %v382 = vsel %vm380, %v310, 0
      %384 = vmatprep.subr.bf16.mxu0 0
      %385 = vmatpush1.bf16.msra.mxu0 %v382
      %386 = vmatprep.subr.bf16.mxu0 0
      %387 = vmatpush1.bf16.msra.mxu0 0
      %388 = vmatprep.subr.bf16.mxu0 0
      %389 = vmatpush1.bf16.msra.mxu0 0
      %390 = vmatprep.subr.bf16.mxu0 0
      %391 = vmatpush1.bf16.msra.mxu0 0
      %392 = vmatprep.subr.bf16.mxu0 0
      %393 = vmatpush1.bf16.msra.mxu0 0
      %394 = vmatprep.subr.bf16.mxu0 0
      %395 = vmatpush1.bf16.msra.mxu0 0
      %396 = vmatprep.subr.bf16.mxu0 0
      %397 = vmatpush1.bf16.msra.mxu0 0
      %398 = vmatprep.subr.bf16.mxu0 0
      %399 = vmatpush1.bf16.msra.mxu0 0
      %400 = vmatprep.subr.bf16.mxu0 0
      %401 = vmatpush1.bf16.msra.mxu0 0
      %402 = vmatprep.subr.bf16.mxu0 0
      %403 = vmatpush1.bf16.msra.mxu0 0
      %404 = vmatprep.subr.bf16.mxu0 0
      %405 = vmatpush1.bf16.msra.mxu0 0
      %406 = vmatprep.subr.bf16.mxu0 0
      %407 = vmatpush1.bf16.msra.mxu0 0
      %408 = vmatprep.subr.bf16.mxu0 0
      %409 = vmatpush1.bf16.msra.mxu0 0
      %410 = vmatprep.subr.bf16.mxu0 0
      %411 = vmatpush1.bf16.msra.mxu0 0
      %412 = vmatprep.subr.bf16.mxu0 0
      %413 = vmatpush1.bf16.msra.mxu0 0
      %414 = vmatprep.subr.bf16.mxu0 0
      %415 = vmatpush1.bf16.msra.mxu0 0
      %416 = vmatprep.mubr.bf16.mxu0 0
      %417 = vmatmul.mubr.bf16.gmra.mrb[0].mxu0 %v378
      %v418 = vpop.f32.mrb[0].mxu0
      %v419 = vadd.f32 0.0, %v418
      %v420 = vpop.f32.mrb[0].mxu0
      %v421 = vpop.f32.mrb[0].mxu0
      %v422 = vpop.f32.mrb[0].mxu0
      %423 = vdwg.mxu0
      %v424 = vpack.c.bf16 %v419, %v419
      %vm425 = vcmask 60416
      %426 = vst.msk [vmem:[%s304] sm:$0xf] %vm425, %v424
      %p427 = scmp.lt.s32.totalorder %s19, 1
      %s428 = scalar_select %p427, %s19, 1
      %p429 = scmp.lt.s32.totalorder %s20, 3
      %s430 = scalar_select %p429, %s20, 3
      %s431 = smul.addr %s428, 4
      %s432 = sadd.s32 %s430, %s431
      %s433 = smul.addr %s432, 4
      %s434 = scalar_lea.vmem %s4, %s433
      // Predicated region
      $region37: #{bert_finetune_cls_forward.13} parent=35 // pred_check
        %p435 = pneg %p157
      $region38: #{bert_finetune_cls_forward.13} parent=35 // pred_check_branch
        %437 = sbr.rel (%p435) target = $region40
      $region39: #{bert_finetune_cls_forward.13} parent=35 // pred_region
        _
      $region40: #{bert_finetune_cls_forward.13} parent=35 // pred_fallthru
        _
    $region36: #{bert_finetune_cls_forward.13} parent=5 // pred_fallthru
      _
    %p438 = scmp.le.s32.totalorder 2, %s10
    // Predicated region
    $region41: #{bert_finetune_cls_forward.13} parent=5 // pred_check
      %p439 = pneg %p438
    $region42: #{bert_finetune_cls_forward.13} parent=5 // pred_check_branch
      %441 = sbr.rel (%p439) target = $region44
    $region43: #{bert_finetune_cls_forward.13} parent=5 // pred_region
      %s442 = ssub.s32 %s10, 2
      // Predicated region
      $region45: #{bert_finetune_cls_forward.13} parent=43 // pred_check
        %p443 = pneg %p163
      $region46: #{bert_finetune_cls_forward.13} parent=43 // pred_check_branch
        %445 = sbr.rel (%p443) target = $region48
      $region47: #{bert_finetune_cls_forward.13} parent=43 // pred_region
        %p446 = scmp.lt.s32.totalorder %s21, 1
        %s447 = scalar_select %p446, %s21, 1
        %p448 = scmp.lt.s32.totalorder %s22, 3
        %s449 = scalar_select %p448, %s22, 3
        %s450 = smul.addr %s447, 4
        %s451 = sadd.s32 %s449, %s450
        %s452 = smul.addr %s451, 4
        %s453 = scalar_lea.vmem %s4, %s452
      $region48: #{bert_finetune_cls_forward.13} parent=43 // pred_fallthru
        _
    $region44: #{bert_finetune_cls_forward.13} parent=5 // pred_fallthru
      _
  $region6: #{bert_finetune_cls_forward.13} parent=0 // loop_footer
    %s14 = sadd.s32 1, %s10
  $region7: #{bert_finetune_cls_forward.13} parent=0 // loop_footer_branch
    %9 = sbr.rel target = $region3
  $region8: #{bert_finetune_cls_forward.13} parent=0 // loop_exit
    _

// kernel: bert_finetune_cls_forward.14
$region0: #{bert_finetune_cls_forward.14}
  #allocation0 [shape = 'u32[]', space=smem, size = 0x4, offset = 0x4, fixed_abs, tag = 'smem constant byte address 0x4 - core index']
  #allocation1 [shape = 'u32[144,128]{1,0:T(1,128)}', space=vmem, size = 0x12000, scoped, tag = 'internal scratch']
  #allocation2 [shape = 'f32[16,32]{1,0:T(8,128)}', space=vmem, size = 0x2000, scoped, tag = 'scratch operand']
  %s0 = inlined_call_operand.vmem [shape: bf16[16,32], index: 0, kind: input, shape index: {}]
  %s1 = inlined_call_operand.vmem [shape: bf16[32,32], index: 1, kind: input, shape index: {}]
  %s2 = inlined_call_operand.vmem [shape: f32[1,32], index: 2, kind: input, shape index: {}]
  %s3 = inlined_call_operand.vmem [shape: bf16[16,32], index: 3, kind: input, shape index: {}]
  %s4 = inlined_call_operand.vmem [shape: f32[1,32], index: 4, kind: input, shape index: {}]
  %s5 = inlined_call_operand.vmem [shape: f32[1,32], index: 5, kind: input, shape index: {}]
  %s6 = inlined_call_operand.vmem [shape: bf16[16,32], index: 6, kind: output, shape index: {}]
  %s7 = sld [smem:[#allocation0]]
  $region42: #{bert_finetune_cls_forward.14} parent=0
    _
  %s9 = ssub.s32 1, %s7
  %s10 = scalar_select 0, %s9, %s7
  // Predicated region
  $region2: #{bert_finetune_cls_forward.14} parent=0 // pred_check
    _
  $region3: #{bert_finetune_cls_forward.14} parent=0 // pred_check_branch
    %12 = sbr.rel (0) target = $region5
  $region4: #{bert_finetune_cls_forward.14} parent=0 // pred_region
    _
  $region5: #{bert_finetune_cls_forward.14} parent=0 // pred_fallthru
    _
  // Predicated region
  $region6: #{bert_finetune_cls_forward.14} parent=0 // pred_check
    _
  $region7: #{bert_finetune_cls_forward.14} parent=0 // pred_check_branch
    %14 = sbr.rel (0) target = $region9
  $region8: #{bert_finetune_cls_forward.14} parent=0 // pred_region
    _
  $region9: #{bert_finetune_cls_forward.14} parent=0 // pred_fallthru
    _
  // Predicated region
  $region10: #{bert_finetune_cls_forward.14} parent=0 // pred_check
    _
  $region11: #{bert_finetune_cls_forward.14} parent=0 // pred_check_branch
    %16 = sbr.rel (0) target = $region13
  $region12: #{bert_finetune_cls_forward.14} parent=0 // pred_region
    _
  $region13: #{bert_finetune_cls_forward.14} parent=0 // pred_fallthru
    _
  // Predicated region
  $region14: #{bert_finetune_cls_forward.14} parent=0 // pred_check
    _
  $region15: #{bert_finetune_cls_forward.14} parent=0 // pred_check_branch
    %18 = sbr.rel (0) target = $region17
  $region16: #{bert_finetune_cls_forward.14} parent=0 // pred_region
    _
  $region17: #{bert_finetune_cls_forward.14} parent=0 // pred_fallthru
    _
  // Predicated region
  $region18: #{bert_finetune_cls_forward.14} parent=0 // pred_check
    _
  $region19: #{bert_finetune_cls_forward.14} parent=0 // pred_check_branch
    %20 = sbr.rel (0) target = $region21
  $region20: #{bert_finetune_cls_forward.14} parent=0 // pred_region
    _
  $region21: #{bert_finetune_cls_forward.14} parent=0 // pred_fallthru
    _
  // Predicated region
  $region22: #{bert_finetune_cls_forward.14} parent=0 // pred_check
    _
  $region23: #{bert_finetune_cls_forward.14} parent=0 // pred_check_branch
    %22 = sbr.rel (0) target = $region25
  $region24: #{bert_finetune_cls_forward.14} parent=0 // pred_region
    _
  $region25: #{bert_finetune_cls_forward.14} parent=0 // pred_fallthru
    _
  %p24 = scmp.eq.s32.totalorder 0, 0
  // Predicated region
  $region26: #{bert_finetune_cls_forward.14} parent=0 // pred_check
    %p25 = pneg %p24
  $region27: #{bert_finetune_cls_forward.14} parent=0 // pred_check_branch
    %27 = sbr.rel (%p25) target = $region29
  $region28: #{bert_finetune_cls_forward.14} parent=0 // pred_region
    %vm28 = vcmask 261120
    %29 = vst.msk [vmem:[#allocation2] sm:$0xff] %vm28, 0.0
    %30 = vst.msk [vmem:[#allocation2 + $0x8] sm:$0xff] %vm28, 0.0
  $region29: #{bert_finetune_cls_forward.14} parent=0 // pred_fallthru
    _
  %v31 = vld [vmem:[#allocation2] sm:$0xff]
  %v32 = vld [vmem:[#allocation2 + $0x8] sm:$0xff]
  %v33 = vld [vmem:[%s0] sm:$0xf]
  %v34 = vld [vmem:[%s0 + $0x4] sm:$0xf]
  %v35 = vld [vmem:[%s1] sm:$0xf]
  %v36 = vld [vmem:[%s1 + $0x4] sm:$0xf]
  %v37 = vld [vmem:[%s1 + $0x8] sm:$0xf]
  %v38 = vld [vmem:[%s1 + $0xc] sm:$0xf]
  %v41 = vunpack.c.l.b16 %v33
  %v42 = vunpack.c.l.b16 %v34
  %v43 = vpack.c.b16 %v42, %v41
  %v48 = vunpack.c.l.b16 %v35
  %v49 = vunpack.c.l.b16 %v36
  %v50 = vunpack.c.l.b16 %v37
  %v51 = vunpack.c.l.b16 %v38
  %v52 = vpack.c.b16 %v49, %v48
  %v53 = vpack.c.b16 %v51, %v50
  %vm56 = vcmask 261120
  %v58 = vsel %vm56, %v43, 0
  %60 = vmatprep.subr.bf16.mxu0 0
  %61 = vmatpush1.bf16.msra.mxu0 %v52
  %62 = vmatprep.subr.bf16.mxu0 0
  %63 = vmatpush1.bf16.msra.mxu0 %v53
  %64 = vmatprep.subr.bf16.mxu0 0
  %65 = vmatpush1.bf16.msra.mxu0 0
  %66 = vmatprep.subr.bf16.mxu0 0
  %67 = vmatpush1.bf16.msra.mxu0 0
  %68 = vmatprep.subr.bf16.mxu0 0
  %69 = vmatpush1.bf16.msra.mxu0 0
  %70 = vmatprep.subr.bf16.mxu0 0
  %71 = vmatpush1.bf16.msra.mxu0 0
  %72 = vmatprep.subr.bf16.mxu0 0
  %73 = vmatpush1.bf16.msra.mxu0 0
  %74 = vmatprep.subr.bf16.mxu0 0
  %75 = vmatpush1.bf16.msra.mxu0 0
  %76 = vmatprep.subr.bf16.mxu0 0
  %77 = vmatpush1.bf16.msra.mxu0 0
  %78 = vmatprep.subr.bf16.mxu0 0
  %79 = vmatpush1.bf16.msra.mxu0 0
  %80 = vmatprep.subr.bf16.mxu0 0
  %81 = vmatpush1.bf16.msra.mxu0 0
  %82 = vmatprep.subr.bf16.mxu0 0
  %83 = vmatpush1.bf16.msra.mxu0 0
  %84 = vmatprep.subr.bf16.mxu0 0
  %85 = vmatpush1.bf16.msra.mxu0 0
  %86 = vmatprep.subr.bf16.mxu0 0
  %87 = vmatpush1.bf16.msra.mxu0 0
  %88 = vmatprep.subr.bf16.mxu0 0
  %89 = vmatpush1.bf16.msra.mxu0 0
  %90 = vmatprep.subr.bf16.mxu0 0
  %91 = vmatpush1.bf16.msra.mxu0 0
  %92 = vmatprep.mubr.bf16.mxu0 0
  %93 = vmatmul.mubr.bf16.gmra.mrb[0].mxu0 %v58
  %v94 = vpop.f32.mrb[0].mxu0
  %v95 = vadd.f32 0.0, %v94
  %v96 = vpop.f32.mrb[0].mxu0
  %v97 = vpop.f32.mrb[0].mxu0
  %v98 = vadd.f32 0.0, %v97
  %v99 = vpop.f32.mrb[0].mxu0
  %100 = vdwg.mxu0
  %v101 = vadd.f32 %v31, %v95
  %v102 = vadd.f32 %v32, %v98
  %103 = vst.msk [vmem:[#allocation2] sm:$0xff] %vm56, %v101
  %104 = vst.msk [vmem:[#allocation2 + $0x8] sm:$0xff] %vm56, %v102
  // Predicated region
  $region30: #{bert_finetune_cls_forward.14} parent=0 // pred_check
    %p105 = pneg %p24
  $region31: #{bert_finetune_cls_forward.14} parent=0 // pred_check_branch
    %107 = sbr.rel (%p105) target = $region33
  $region32: #{bert_finetune_cls_forward.14} parent=0 // pred_region
    %v108 = vld [vmem:[#allocation2] sm:$0xff]
    %v109 = vld [vmem:[#allocation2 + $0x8] sm:$0xff]
    %v110 = vld [vmem:[%s2] sm:$0x1]
    %v112 = vlaneseq
    %v113 = vshrl.u32 %v112, 7
    %v114 = vsub.s32 0, %v113
    %v115 = vrot.slane %v110, %v114
    %v117 = vadd.f32 %v108, %v115
    %v118 = vadd.f32 %v109, %v115
    %v119 = vld [vmem:[%s3] sm:$0xf]
    %v120 = vld [vmem:[%s3 + $0x4] sm:$0xf]
    %v121 = vunpack.c.l.bf16 %v119
    %v122 = vunpack.c.l.bf16 %v120
    %v123 = vadd.f32 %v117, %v121
    %v124 = vadd.f32 %v118, %v122
    %v125 = vsel %vm56, %v123, 0.0
    %126 = vadd.xlane.f32.xlu0 %v125
    %v127 = vpop.xlane.xlu0 %126
    %v128 = vsel %vm56, %v124, 0.0
    %129 = vadd.xlane.f32.xlu0 %v128
    %v130 = vpop.xlane.xlu0 %129
    %v131 = vrcp.pop 32.0
    %v132 = vmul.f32 %v127, %v131
    %v133 = vmul.f32 %v130, %v131
    %v134 = vsub.f32 %v123, %v132
    %v135 = vsub.f32 %v124, %v133
    %v136 = vmul.f32 %v134, %v134
    %v137 = vmul.f32 %v135, %v135
    %v138 = vsel %vm56, %v136, 0.0
    %139 = vadd.xlane.f32.xlu0 %v138
    %v140 = vpop.xlane.xlu0 %139
    %v141 = vsel %vm56, %v137, 0.0
    %142 = vadd.xlane.f32.xlu0 %v141
    %v143 = vpop.xlane.xlu0 %142
    %v144 = vmul.f32 %v140, %v131
    %v145 = vmul.f32 %v143, %v131
    %v146 = vadd.f32 %v144, 1e-12
    %v147 = vadd.f32 %v145, 1e-12
    %v148 = vrsqrt.pop %v146
    %v149 = vrsqrt.pop %v147
    %v150 = vmul.f32 %v134, %v148
    %v151 = vmul.f32 %v135, %v149
    %v152 = vld [vmem:[%s4] sm:$0x1]
    %v154 = vlaneseq
    %v155 = vshrl.u32 %v154, 7
    %v156 = vsub.s32 0, %v155
    %v157 = vrot.slane %v152, %v156
    %v159 = vmul.f32 %v150, %v157
    %v160 = vmul.f32 %v151, %v157
    %v161 = vld [vmem:[%s5] sm:$0x1]
    %v163 = vlaneseq
    %v164 = vshrl.u32 %v163, 7
    %v165 = vsub.s32 0, %v164
    %v166 = vrot.slane %v161, %v165
    %v168 = vadd.f32 %v159, %v166
    %v169 = vadd.f32 %v160, %v166
    %v170 = vpack.c.bf16 %v169, %v168
    %v172 = vunpack.c.l.b16 %v170
    %v173 = vunpack.c.h.b16 %v170
    %v174 = vpack.c.b16 %v172, %v172
    %v175 = vpack.c.b16 %v173, %v173
    %vm178 = vcmask 257024
    %179 = vst.msk [vmem:[%s6] sm:$0xf] %vm178, %v174
    %180 = vst.msk [vmem:[%s6 + $0x4] sm:$0xf] %vm178, %v175
  $region33: #{bert_finetune_cls_forward.14} parent=0 // pred_fallthru
    _
  // Predicated region
  $region34: #{bert_finetune_cls_forward.14} parent=0 // pred_check
    _
  $region35: #{bert_finetune_cls_forward.14} parent=0 // pred_check_branch
    %182 = sbr.rel (0) target = $region37
  $region36: #{bert_finetune_cls_forward.14} parent=0 // pred_region
    _
  $region37: #{bert_finetune_cls_forward.14} parent=0 // pred_fallthru
    _
  // Predicated region
  $region38: #{bert_finetune_cls_forward.14} parent=0 // pred_check
    _
  $region39: #{bert_finetune_cls_forward.14} parent=0 // pred_check_branch
    %184 = sbr.rel (0) target = $region41
  $region40: #{bert_finetune_cls_forward.14} parent=0 // pred_region
    _
  $region41: #{bert_finetune_cls_forward.14} parent=0 // pred_fallthru
    _

// kernel: bert_finetune_cls_forward.15
$region0: #{bert_finetune_cls_forward.15}
  #allocation0 [shape = 'u32[]', space=smem, size = 0x4, offset = 0x4, fixed_abs, tag = 'smem constant byte address 0x4 - core index']
  #allocation1 [shape = 'u32[144,128]{1,0:T(1,128)}', space=vmem, size = 0x12000, scoped, tag = 'internal scratch']
  #allocation2 [shape = 'f32[16,128]{1,0:T(8,128)}', space=vmem, size = 0x2000, scoped, tag = 'scratch operand']
  %s0 = inlined_call_operand.vmem [shape: bf16[16,32], index: 0, kind: input, shape index: {}]
  %s1 = inlined_call_operand.vmem [shape: bf16[32,128], index: 1, kind: input, shape index: {}]
  %s2 = inlined_call_operand.vmem [shape: f32[1,128], index: 2, kind: input, shape index: {}]
  %s3 = inlined_call_operand.vmem [shape: bf16[16,128], index: 3, kind: output, shape index: {}]
  %s4 = sld [smem:[#allocation0]]
  $region30: #{bert_finetune_cls_forward.15} parent=0
    _
  %s6 = ssub.s32 1, %s4
  %s7 = scalar_select 0, %s6, %s4
  // Predicated region
  $region2: #{bert_finetune_cls_forward.15} parent=0 // pred_check
    _
  $region3: #{bert_finetune_cls_forward.15} parent=0 // pred_check_branch
    %9 = sbr.rel (0) target = $region5
  $region4: #{bert_finetune_cls_forward.15} parent=0 // pred_region
    _
  $region5: #{bert_finetune_cls_forward.15} parent=0 // pred_fallthru
    _
  // Predicated region
  $region6: #{bert_finetune_cls_forward.15} parent=0 // pred_check
    _
  $region7: #{bert_finetune_cls_forward.15} parent=0 // pred_check_branch
    %11 = sbr.rel (0) target = $region9
  $region8: #{bert_finetune_cls_forward.15} parent=0 // pred_region
    _
  $region9: #{bert_finetune_cls_forward.15} parent=0 // pred_fallthru
    _
  // Predicated region
  $region10: #{bert_finetune_cls_forward.15} parent=0 // pred_check
    _
  $region11: #{bert_finetune_cls_forward.15} parent=0 // pred_check_branch
    %13 = sbr.rel (0) target = $region13
  $region12: #{bert_finetune_cls_forward.15} parent=0 // pred_region
    _
  $region13: #{bert_finetune_cls_forward.15} parent=0 // pred_fallthru
    _
  %p15 = scmp.eq.s32.totalorder 0, 0
  // Predicated region
  $region14: #{bert_finetune_cls_forward.15} parent=0 // pred_check
    %p16 = pneg %p15
  $region15: #{bert_finetune_cls_forward.15} parent=0 // pred_check_branch
    %18 = sbr.rel (%p16) target = $region17
  $region16: #{bert_finetune_cls_forward.15} parent=0 // pred_region
    %19 = vst [vmem:[#allocation2] sm:$0xff] 0.0
    %20 = vst [vmem:[#allocation2 + $0x8] sm:$0xff] 0.0
  $region17: #{bert_finetune_cls_forward.15} parent=0 // pred_fallthru
    _
  %v21 = vld [vmem:[#allocation2] sm:$0xff]
  %v22 = vld [vmem:[#allocation2 + $0x8] sm:$0xff]
  %v23 = vld [vmem:[%s0] sm:$0xf]
  %v24 = vld [vmem:[%s0 + $0x4] sm:$0xf]
  %v25 = vld [vmem:[%s1] sm:$0xf]
  %v26 = vld [vmem:[%s1 + $0x4] sm:$0xf]
  %v27 = vld [vmem:[%s1 + $0x8] sm:$0xf]
  %v28 = vld [vmem:[%s1 + $0xc] sm:$0xf]
  %v31 = vunpack.c.l.b16 %v23
  %v32 = vunpack.c.l.b16 %v24
  %v33 = vpack.c.b16 %v32, %v31
  %v38 = vunpack.c.l.b16 %v25
  %v39 = vunpack.c.l.b16 %v26
  %v40 = vunpack.c.l.b16 %v27
  %v41 = vunpack.c.l.b16 %v28
  %v42 = vpack.c.b16 %v39, %v38
  %v43 = vpack.c.b16 %v41, %v40
  %vm46 = vcmask 261120
  %v48 = vsel %vm46, %v33, 0
  %50 = vmatprep.subr.bf16.mxu0 0
  %51 = vmatpush1.bf16.msra.mxu0 %v42
  %52 = vmatprep.subr.bf16.mxu0 0
  %53 = vmatpush1.bf16.msra.mxu0 %v43
  %54 = vmatprep.subr.bf16.mxu0 0
  %55 = vmatpush1.bf16.msra.mxu0 0
  %56 = vmatprep.subr.bf16.mxu0 0
  %57 = vmatpush1.bf16.msra.mxu0 0
  %58 = vmatprep.subr.bf16.mxu0 0
  %59 = vmatpush1.bf16.msra.mxu0 0
  %60 = vmatprep.subr.bf16.mxu0 0
  %61 = vmatpush1.bf16.msra.mxu0 0
  %62 = vmatprep.subr.bf16.mxu0 0
  %63 = vmatpush1.bf16.msra.mxu0 0
  %64 = vmatprep.subr.bf16.mxu0 0
  %65 = vmatpush1.bf16.msra.mxu0 0
  %66 = vmatprep.subr.bf16.mxu0 0
  %67 = vmatpush1.bf16.msra.mxu0 0
  %68 = vmatprep.subr.bf16.mxu0 0
  %69 = vmatpush1.bf16.msra.mxu0 0
  %70 = vmatprep.subr.bf16.mxu0 0
  %71 = vmatpush1.bf16.msra.mxu0 0
  %72 = vmatprep.subr.bf16.mxu0 0
  %73 = vmatpush1.bf16.msra.mxu0 0
  %74 = vmatprep.subr.bf16.mxu0 0
  %75 = vmatpush1.bf16.msra.mxu0 0
  %76 = vmatprep.subr.bf16.mxu0 0
  %77 = vmatpush1.bf16.msra.mxu0 0
  %78 = vmatprep.subr.bf16.mxu0 0
  %79 = vmatpush1.bf16.msra.mxu0 0
  %80 = vmatprep.subr.bf16.mxu0 0
  %81 = vmatpush1.bf16.msra.mxu0 0
  %82 = vmatprep.mubr.bf16.mxu0 0
  %83 = vmatmul.mubr.bf16.gmra.mrb[0].mxu0 %v48
  %v84 = vpop.f32.mrb[0].mxu0
  %v85 = vadd.f32 0.0, %v84
  %v86 = vpop.f32.mrb[0].mxu0
  %v87 = vpop.f32.mrb[0].mxu0
  %v88 = vadd.f32 0.0, %v87
  %v89 = vpop.f32.mrb[0].mxu0
  %90 = vdwg.mxu0
  %v91 = vadd.f32 %v21, %v85
  %v92 = vadd.f32 %v22, %v88
  %93 = vst [vmem:[#allocation2] sm:$0xff] %v91
  %94 = vst [vmem:[#allocation2 + $0x8] sm:$0xff] %v92
  // Predicated region
  $region18: #{bert_finetune_cls_forward.15} parent=0 // pred_check
    %p95 = pneg %p15
  $region19: #{bert_finetune_cls_forward.15} parent=0 // pred_check_branch
    %97 = sbr.rel (%p95) target = $region21
  $region20: #{bert_finetune_cls_forward.15} parent=0 // pred_region
    %v98 = vld [vmem:[#allocation2] sm:$0xff]
    %v99 = vld [vmem:[#allocation2 + $0x8] sm:$0xff]
    %v100 = vld [vmem:[%s2] sm:$0x1]
    %v102 = vlaneseq
    %v103 = vshrl.u32 %v102, 7
    %v104 = vsub.s32 0, %v103
    %v105 = vrot.slane %v100, %v104
    %v107 = vadd.f32 %v98, %v105
    %v108 = vadd.f32 %v99, %v105
    %v109 = vmul.f32 %v107, 0.5
    %v110 = vmul.f32 %v108, 0.5
    %v111 = vmul.f32 %v107, 0.70710677
    %v112 = vmul.f32 %v108, 0.70710677
    %v113 = verf.f32.pop %v111
    %v114 = verf.f32.pop %v112
    %v115 = vadd.f32 %v113, 1.0
    %v116 = vadd.f32 %v114, 1.0
    %v117 = vmul.f32 %v109, %v115
    %v118 = vmul.f32 %v110, %v116
    %v119 = vpack.c.bf16 %v118, %v117
    %v121 = vunpack.c.l.b16 %v119
    %v122 = vunpack.c.h.b16 %v119
    %v123 = vpack.c.b16 %v121, %v121
    %v124 = vpack.c.b16 %v122, %v122
    %127 = vst [vmem:[%s3] sm:$0xf] %v123
    %128 = vst [vmem:[%s3 + $0x4] sm:$0xf] %v124
  $region21: #{bert_finetune_cls_forward.15} parent=0 // pred_fallthru
    _
  // Predicated region
  $region22: #{bert_finetune_cls_forward.15} parent=0 // pred_check
    _
  $region23: #{bert_finetune_cls_forward.15} parent=0 // pred_check_branch
    %130 = sbr.rel (0) target = $region25
  $region24: #{bert_finetune_cls_forward.15} parent=0 // pred_region
    _
  $region25: #{bert_finetune_cls_forward.15} parent=0 // pred_fallthru
    _
  // Predicated region
  $region26: #{bert_finetune_cls_forward.15} parent=0 // pred_check
    _
  $region27: #{bert_finetune_cls_forward.15} parent=0 // pred_check_branch
    %132 = sbr.rel (0) target = $region29
  $region28: #{bert_finetune_cls_forward.15} parent=0 // pred_region
    _
  $region29: #{bert_finetune_cls_forward.15} parent=0 // pred_fallthru
    _

// kernel: bert_finetune_cls_forward.16
$region0: #{bert_finetune_cls_forward.16}
  #allocation0 [shape = 'u32[]', space=smem, size = 0x4, offset = 0x4, fixed_abs, tag = 'smem constant byte address 0x4 - core index']
  #allocation1 [shape = 'u32[144,128]{1,0:T(1,128)}', space=vmem, size = 0x12000, scoped, tag = 'internal scratch']
  #allocation2 [shape = 'f32[16,32]{1,0:T(8,128)}', space=vmem, size = 0x2000, scoped, tag = 'scratch operand']
  %s0 = inlined_call_operand.vmem [shape: bf16[16,128], index: 0, kind: input, shape index: {}]
  %s1 = inlined_call_operand.vmem [shape: bf16[128,32], index: 1, kind: input, shape index: {}]
  %s2 = inlined_call_operand.vmem [shape: f32[1,32], index: 2, kind: input, shape index: {}]
  %s3 = inlined_call_operand.vmem [shape: bf16[16,32], index: 3, kind: input, shape index: {}]
  %s4 = inlined_call_operand.vmem [shape: f32[1,32], index: 4, kind: input, shape index: {}]
  %s5 = inlined_call_operand.vmem [shape: f32[1,32], index: 5, kind: input, shape index: {}]
  %s6 = inlined_call_operand.vmem [shape: bf16[16,32], index: 6, kind: output, shape index: {}]
  %s7 = sld [smem:[#allocation0]]
  $region42: #{bert_finetune_cls_forward.16} parent=0
    _
  %s9 = ssub.s32 1, %s7
  %s10 = scalar_select 0, %s9, %s7
  // Predicated region
  $region2: #{bert_finetune_cls_forward.16} parent=0 // pred_check
    _
  $region3: #{bert_finetune_cls_forward.16} parent=0 // pred_check_branch
    %12 = sbr.rel (0) target = $region5
  $region4: #{bert_finetune_cls_forward.16} parent=0 // pred_region
    _
  $region5: #{bert_finetune_cls_forward.16} parent=0 // pred_fallthru
    _
  // Predicated region
  $region6: #{bert_finetune_cls_forward.16} parent=0 // pred_check
    _
  $region7: #{bert_finetune_cls_forward.16} parent=0 // pred_check_branch
    %14 = sbr.rel (0) target = $region9
  $region8: #{bert_finetune_cls_forward.16} parent=0 // pred_region
    _
  $region9: #{bert_finetune_cls_forward.16} parent=0 // pred_fallthru
    _
  // Predicated region
  $region10: #{bert_finetune_cls_forward.16} parent=0 // pred_check
    _
  $region11: #{bert_finetune_cls_forward.16} parent=0 // pred_check_branch
    %16 = sbr.rel (0) target = $region13
  $region12: #{bert_finetune_cls_forward.16} parent=0 // pred_region
    _
  $region13: #{bert_finetune_cls_forward.16} parent=0 // pred_fallthru
    _
  // Predicated region
  $region14: #{bert_finetune_cls_forward.16} parent=0 // pred_check
    _
  $region15: #{bert_finetune_cls_forward.16} parent=0 // pred_check_branch
    %18 = sbr.rel (0) target = $region17
  $region16: #{bert_finetune_cls_forward.16} parent=0 // pred_region
    _
  $region17: #{bert_finetune_cls_forward.16} parent=0 // pred_fallthru
    _
  // Predicated region
  $region18: #{bert_finetune_cls_forward.16} parent=0 // pred_check
    _
  $region19: #{bert_finetune_cls_forward.16} parent=0 // pred_check_branch
    %20 = sbr.rel (0) target = $region21
  $region20: #{bert_finetune_cls_forward.16} parent=0 // pred_region
    _
  $region21: #{bert_finetune_cls_forward.16} parent=0 // pred_fallthru
    _
  // Predicated region
  $region22: #{bert_finetune_cls_forward.16} parent=0 // pred_check
    _
  $region23: #{bert_finetune_cls_forward.16} parent=0 // pred_check_branch
    %22 = sbr.rel (0) target = $region25
  $region24: #{bert_finetune_cls_forward.16} parent=0 // pred_region
    _
  $region25: #{bert_finetune_cls_forward.16} parent=0 // pred_fallthru
    _
  %p24 = scmp.eq.s32.totalorder 0, 0
  // Predicated region
  $region26: #{bert_finetune_cls_forward.16} parent=0 // pred_check
    %p25 = pneg %p24
  $region27: #{bert_finetune_cls_forward.16} parent=0 // pred_check_branch
    %27 = sbr.rel (%p25) target = $region29
  $region28: #{bert_finetune_cls_forward.16} parent=0 // pred_region
    %vm28 = vcmask 261120
    %29 = vst.msk [vmem:[#allocation2] sm:$0xff] %vm28, 0.0
    %30 = vst.msk [vmem:[#allocation2 + $0x8] sm:$0xff] %vm28, 0.0
  $region29: #{bert_finetune_cls_forward.16} parent=0 // pred_fallthru
    _
  %v31 = vld [vmem:[#allocation2] sm:$0xff]
  %v32 = vld [vmem:[#allocation2 + $0x8] sm:$0xff]
  %v33 = vld [vmem:[%s0] sm:$0xf]
  %v34 = vld [vmem:[%s0 + $0x4] sm:$0xf]
  %v35 = vld [vmem:[%s1] sm:$0xf]
  %v36 = vld [vmem:[%s1 + $0x4] sm:$0xf]
  %v37 = vld [vmem:[%s1 + $0x8] sm:$0xf]
  %v38 = vld [vmem:[%s1 + $0xc] sm:$0xf]
  %v39 = vld [vmem:[%s1 + $0x10] sm:$0xf]
  %v40 = vld [vmem:[%s1 + $0x14] sm:$0xf]
  %v41 = vld [vmem:[%s1 + $0x18] sm:$0xf]
  %v42 = vld [vmem:[%s1 + $0x1c] sm:$0xf]
  %v43 = vld [vmem:[%s1 + $0x20] sm:$0xf]
  %v44 = vld [vmem:[%s1 + $0x24] sm:$0xf]
  %v45 = vld [vmem:[%s1 + $0x28] sm:$0xf]
  %v46 = vld [vmem:[%s1 + $0x2c] sm:$0xf]
  %v47 = vld [vmem:[%s1 + $0x30] sm:$0xf]
  %v48 = vld [vmem:[%s1 + $0x34] sm:$0xf]
  %v49 = vld [vmem:[%s1 + $0x38] sm:$0xf]
  %v50 = vld [vmem:[%s1 + $0x3c] sm:$0xf]
  %v53 = vunpack.c.l.b16 %v33
  %v54 = vunpack.c.l.b16 %v34
  %v55 = vpack.c.b16 %v54, %v53
  %v73 = vunpack.c.l.b16 %v35
  %v74 = vunpack.c.l.b16 %v36
  %v75 = vunpack.c.l.b16 %v37
  %v76 = vunpack.c.l.b16 %v38
  %v77 = vunpack.c.l.b16 %v39
  %v78 = vunpack.c.l.b16 %v40
  %v79 = vunpack.c.l.b16 %v41
  %v80 = vunpack.c.l.b16 %v42
  %v81 = vunpack.c.l.b16 %v43
  %v82 = vunpack.c.l.b16 %v44
  %v83 = vunpack.c.l.b16 %v45
  %v84 = vunpack.c.l.b16 %v46
  %v85 = vunpack.c.l.b16 %v47
  %v86 = vunpack.c.l.b16 %v48
  %v87 = vunpack.c.l.b16 %v49
  %v88 = vunpack.c.l.b16 %v50
  %v89 = vpack.c.b16 %v74, %v73
  %v90 = vpack.c.b16 %v76, %v75
  %v91 = vpack.c.b16 %v78, %v77
  %v92 = vpack.c.b16 %v80, %v79
  %v93 = vpack.c.b16 %v82, %v81
  %v94 = vpack.c.b16 %v84, %v83
  %v95 = vpack.c.b16 %v86, %v85
  %v96 = vpack.c.b16 %v88, %v87
  %105 = vmatprep.subr.bf16.mxu0 0
  %106 = vmatpush1.bf16.msra.mxu0 %v89
  %107 = vmatprep.subr.bf16.mxu0 0
  %108 = vmatpush1.bf16.msra.mxu0 %v90
  %109 = vmatprep.subr.bf16.mxu0 0
  %110 = vmatpush1.bf16.msra.mxu0 %v91
  %111 = vmatprep.subr.bf16.mxu0 0
  %112 = vmatpush1.bf16.msra.mxu0 %v92
  %113 = vmatprep.subr.bf16.mxu0 0
  %114 = vmatpush1.bf16.msra.mxu0 %v93
  %115 = vmatprep.subr.bf16.mxu0 0
  %116 = vmatpush1.bf16.msra.mxu0 %v94
  %117 = vmatprep.subr.bf16.mxu0 0
  %118 = vmatpush1.bf16.msra.mxu0 %v95
  %119 = vmatprep.subr.bf16.mxu0 0
  %120 = vmatpush1.bf16.msra.mxu0 %v96
  %121 = vmatprep.subr.bf16.mxu0 0
  %122 = vmatpush1.bf16.msra.mxu0 0
  %123 = vmatprep.subr.bf16.mxu0 0
  %124 = vmatpush1.bf16.msra.mxu0 0
  %125 = vmatprep.subr.bf16.mxu0 0
  %126 = vmatpush1.bf16.msra.mxu0 0
  %127 = vmatprep.subr.bf16.mxu0 0
  %128 = vmatpush1.bf16.msra.mxu0 0
  %129 = vmatprep.subr.bf16.mxu0 0
  %130 = vmatpush1.bf16.msra.mxu0 0
  %131 = vmatprep.subr.bf16.mxu0 0
  %132 = vmatpush1.bf16.msra.mxu0 0
  %133 = vmatprep.subr.bf16.mxu0 0
  %134 = vmatpush1.bf16.msra.mxu0 0
  %135 = vmatprep.subr.bf16.mxu0 0
  %136 = vmatpush1.bf16.msra.mxu0 0
  %137 = vmatprep.mubr.bf16.mxu0 0
  %138 = vmatmul.mubr.bf16.gmra.mrb[0].mxu0 %v55
  %v139 = vpop.f32.mrb[0].mxu0
  %v140 = vadd.f32 0.0, %v139
  %v141 = vpop.f32.mrb[0].mxu0
  %v142 = vpop.f32.mrb[0].mxu0
  %v143 = vadd.f32 0.0, %v142
  %v144 = vpop.f32.mrb[0].mxu0
  %145 = vdwg.mxu0
  %v146 = vadd.f32 %v31, %v140
  %v147 = vadd.f32 %v32, %v143
  %vm148 = vcmask 261120
  %149 = vst.msk [vmem:[#allocation2] sm:$0xff] %vm148, %v146
  %150 = vst.msk [vmem:[#allocation2 + $0x8] sm:$0xff] %vm148, %v147
  // Predicated region
  $region30: #{bert_finetune_cls_forward.16} parent=0 // pred_check
    %p151 = pneg %p24
  $region31: #{bert_finetune_cls_forward.16} parent=0 // pred_check_branch
    %153 = sbr.rel (%p151) target = $region33
  $region32: #{bert_finetune_cls_forward.16} parent=0 // pred_region
    %v154 = vld [vmem:[#allocation2] sm:$0xff]
    %v155 = vld [vmem:[#allocation2 + $0x8] sm:$0xff]
    %v156 = vld [vmem:[%s2] sm:$0x1]
    %v158 = vlaneseq
    %v159 = vshrl.u32 %v158, 7
    %v160 = vsub.s32 0, %v159
    %v161 = vrot.slane %v156, %v160
    %v163 = vadd.f32 %v154, %v161
    %v164 = vadd.f32 %v155, %v161
    %v165 = vld [vmem:[%s3] sm:$0xf]
    %v166 = vld [vmem:[%s3 + $0x4] sm:$0xf]
    %v167 = vunpack.c.l.bf16 %v165
    %v168 = vunpack.c.l.bf16 %v166
    %v169 = vadd.f32 %v163, %v167
    %v170 = vadd.f32 %v164, %v168
    %v171 = vsel %vm148, %v169, 0.0
    %172 = vadd.xlane.f32.xlu0 %v171
    %v173 = vpop.xlane.xlu0 %172
    %v174 = vsel %vm148, %v170, 0.0
    %175 = vadd.xlane.f32.xlu0 %v174
    %v176 = vpop.xlane.xlu0 %175
    %v177 = vrcp.pop 32.0
    %v178 = vmul.f32 %v173, %v177
    %v179 = vmul.f32 %v176, %v177
    %v180 = vsub.f32 %v169, %v178
    %v181 = vsub.f32 %v170, %v179
    %v182 = vmul.f32 %v180, %v180
    %v183 = vmul.f32 %v181, %v181
    %v184 = vsel %vm148, %v182, 0.0
    %185 = vadd.xlane.f32.xlu0 %v184
    %v186 = vpop.xlane.xlu0 %185
    %v187 = vsel %vm148, %v183, 0.0
    %188 = vadd.xlane.f32.xlu0 %v187
    %v189 = vpop.xlane.xlu0 %188
    %v190 = vmul.f32 %v186, %v177
    %v191 = vmul.f32 %v189, %v177
    %v192 = vadd.f32 %v190, 1e-12
    %v193 = vadd.f32 %v191, 1e-12
    %v194 = vrsqrt.pop %v192
    %v195 = vrsqrt.pop %v193
    %v196 = vmul.f32 %v180, %v194
    %v197 = vmul.f32 %v181, %v195
    %v198 = vld [vmem:[%s4] sm:$0x1]
    %v200 = vlaneseq
    %v201 = vshrl.u32 %v200, 7
    %v202 = vsub.s32 0, %v201
    %v203 = vrot.slane %v198, %v202
    %v205 = vmul.f32 %v196, %v203
    %v206 = vmul.f32 %v197, %v203
    %v207 = vld [vmem:[%s5] sm:$0x1]
    %v209 = vlaneseq
    %v210 = vshrl.u32 %v209, 7
    %v211 = vsub.s32 0, %v210
    %v212 = vrot.slane %v207, %v211
    %v214 = vadd.f32 %v205, %v212
    %v215 = vadd.f32 %v206, %v212
    %v216 = vpack.c.bf16 %v215, %v214
    %v218 = vunpack.c.l.b16 %v216
    %v219 = vunpack.c.h.b16 %v216
    %v220 = vpack.c.b16 %v218, %v218
    %v221 = vpack.c.b16 %v219, %v219
    %vm224 = vcmask 257024
    %225 = vst.msk [vmem:[%s6] sm:$0xf] %vm224, %v220
    %226 = vst.msk [vmem:[%s6 + $0x4] sm:$0xf] %vm224, %v221
  $region33: #{bert_finetune_cls_forward.16} parent=0 // pred_fallthru
    _
  // Predicated region
  $region34: #{bert_finetune_cls_forward.16} parent=0 // pred_check
    _
  $region35: #{bert_finetune_cls_forward.16} parent=0 // pred_check_branch
    %228 = sbr.rel (0) target = $region37
  $region36: #{bert_finetune_cls_forward.16} parent=0 // pred_region
    _
  $region37: #{bert_finetune_cls_forward.16} parent=0 // pred_fallthru
    _
  // Predicated region
  $region38: #{bert_finetune_cls_forward.16} parent=0 // pred_check
    _
  $region39: #{bert_finetune_cls_forward.16} parent=0 // pred_check_branch
    %230 = sbr.rel (0) target = $region41
  $region40: #{bert_finetune_cls_forward.16} parent=0 // pred_region
    _
  $region41: #{bert_finetune_cls_forward.16} parent=0 // pred_fallthru
    _

</llo_original>
